<compile_context>
chip_gen: v6e
topology: v6e:2x2x1
jax: 0.10.0
libtpu: 0.0.40
codegen_flags: <defaults>
</compile_context>

<pallas_src>
import functools
import math

import jax
import jax.numpy as jnp
from jax.experimental import pallas as pl
from jax.experimental.pallas import tpu as pltpu

EPS = 1e-5
NEG_INF = -1e9


# ---------------------------------------------------------------- in-kernel helpers
def _layer_norm(x, gamma, beta):
    mean = jnp.mean(x, axis=-1, keepdims=True)
    var = jnp.mean((x - mean) ** 2, axis=-1, keepdims=True)
    return (x - mean) * jax.lax.rsqrt(var + EPS) * gamma + beta


# ---------------------------------------------------------------- fused transformer kernel
def _fused_kernel(x_ref, bias_ref,
                  wq_ref, bq_ref, wk_ref, bk_ref, wv_ref, bv_ref, wo_ref, bo_ref,
                  ln1g_ref, ln1b_ref, ln2g_ref, ln2b_ref,
                  w1_ref, b1_ref, w2_ref, b2_ref,
                  lnfg_ref, lnfb_ref, wout_ref, bout_ref,
                  o_ref, x_sc, *, n_heads, batch, seq):
    l = pl.program_id(0)
    d_model = x_sc.shape[-1]
    n_rows = batch * seq
    d_k = d_model // n_heads
    scale = 1.0 / math.sqrt(d_k)

    # Load embeddings into the resident VMEM activation at the first layer only.
    @pl.when(l == 0)
    def _():
        x_sc[...] = x_ref[...]

    x = x_sc[...]                      # [B*S, D] float32 residual stream
    bias = bias_ref[...]               # [B, S, S] additive mask bias (0 / -1e9), VMEM-resident

    # --- sublayer 1: pre-LN multi-head self-attention + residual ---------------------------
    h = _layer_norm(x, ln1g_ref[0], ln1b_ref[0]).astype(jnp.bfloat16)
    q = jnp.dot(h, wq_ref[0], preferred_element_type=jnp.float32) + bq_ref[0]
    k = jnp.dot(h, wk_ref[0], preferred_element_type=jnp.float32) + bk_ref[0]
    v = jnp.dot(h, wv_ref[0], preferred_element_type=jnp.float32) + bv_ref[0]
    q = q * scale                      # fold 1/sqrt(d_k) into q once

    q3 = q.reshape(batch, seq, d_model).astype(jnp.bfloat16)
    k3 = k.reshape(batch, seq, d_model).astype(jnp.bfloat16)
    v3 = v.reshape(batch, seq, d_model).astype(jnp.bfloat16)
    wo = wo_ref[0]                     # [D, D] bf16

    attn = jnp.zeros((n_rows, d_model), jnp.float32)
    # Static head loop (H small); batch handled inside each einsum.  Head outputs are folded
    # straight into the output projection (no lane-dim concat).
    for hh in range(n_heads):
        sl = slice(hh * d_k, (hh + 1) * d_k)
        s = jnp.einsum('bqd,bkd->bqk', q3[:, :, sl], k3[:, :, sl],
                       preferred_element_type=jnp.float32)          # [B, S, S]
        s = s + bias
        m = jnp.max(s, axis=-1, keepdims=True)
        e = jnp.exp(s - m)
        p = e * pl.reciprocal(jnp.sum(e, axis=-1, keepdims=True), approx=True)
        ctx = jnp.einsum('bqk,bkd->bqd', p.astype(jnp.bfloat16), v3[:, :, sl],
                         preferred_element_type=jnp.float32)         # [B, S, d_k]
        ctx2 = ctx.reshape(n_rows, d_k).astype(jnp.bfloat16)
        attn = attn + jnp.dot(ctx2, wo[sl, :], preferred_element_type=jnp.float32)
    x = x + attn + bo_ref[0]

    # --- sublayer 2: pre-LN feed-forward (Linear -> ReLU -> Linear) + residual -------------
    h2 = _layer_norm(x, ln2g_ref[0], ln2b_ref[0]).astype(jnp.bfloat16)
    f = jnp.dot(h2, w1_ref[0], preferred_element_type=jnp.float32) + b1_ref[0]
    f = jnp.maximum(f, 0.0).astype(jnp.bfloat16)
    f = jnp.dot(f, w2_ref[0], preferred_element_type=jnp.float32) + b2_ref[0]
    x = x + f
    x_sc[...] = x                      # carry residual stream to the next layer

    # --- output head at the last layer: final LN -> Linear -> log_softmax ------------------
    @pl.when(l == pl.num_programs(0) - 1)
    def _():
        hf = _layer_norm(x, lnfg_ref[...], lnfb_ref[...]).astype(jnp.bfloat16)
        logits = jnp.dot(hf, wout_ref[...], preferred_element_type=jnp.float32) + bout_ref[...]
        mx = jnp.max(logits, axis=-1, keepdims=True)
        sh = logits - mx
        lse = jnp.log(jnp.sum(jnp.exp(sh), axis=-1, keepdims=True))
        o_ref[...] = sh - lse          # [B*S, Vpad] lane-dense (128-multiple) store


# ---------------------------------------------------------------- pallas_call wrapper
def _stacked_spec(a):
    zeros = (0,) * (a.ndim - 1)
    return pl.BlockSpec((1,) + tuple(a.shape[1:]), lambda l, z=zeros: (l,) + z)


def _const_spec(a):
    zeros = (0,) * a.ndim
    return pl.BlockSpec(tuple(a.shape), lambda l, z=zeros: z)


def full_transformer_forward(tokens, mask, params, n_heads, vocab_size):
    B, S = tokens.shape
    D = params["emb"].shape[1]
    L = params["wq"].shape[0]
    Vpad = params["w_out"].shape[1]

    # Embedding (glue, plain JAX): scaled token embedding + sinusoidal positional encoding.
    # TODO(synk): the token gather could be moved in-kernel with pl.Element + scalar prefetch,
    # but at these sizes the XLA gather is already negligible.
    x = params["emb"][tokens] * math.sqrt(D) + params["pe"][:S][None, :, :]
    x2d = x.astype(jnp.float32).reshape(B * S, D)
    # Convert the module's 0/1 mask once into an additive score bias.
    bias = jnp.where(mask == 0.0, jnp.float32(NEG_INF), jnp.float32(0.0))

    block_keys = ["wq", "bq", "wk", "bk", "wv", "bv", "wo", "bo",
                  "ln1g", "ln1b", "ln2g", "ln2b", "w1", "b1", "w2", "b2"]
    stacked = [params[kk] for kk in block_keys]                 # each [L, ...], streamed per layer
    head = [params["lnf_g"], params["lnf_b"], params["w_out"], params["b_out"]]

    args = (x2d, bias, *stacked, *head)
    in_specs = [_const_spec(x2d), _const_spec(bias)]
    in_specs += [_stacked_spec(a) for a in stacked]
    in_specs += [_const_spec(a) for a in head]

    out = pl.pallas_call(
        functools.partial(_fused_kernel, n_heads=n_heads, batch=B, seq=S),
        out_shape=jax.ShapeDtypeStruct((B * S, Vpad), jnp.float32),
        grid=(L,),
        in_specs=in_specs,
        out_specs=pl.BlockSpec((B * S, Vpad), lambda l: (0, 0)),
        scratch_shapes=[pltpu.VMEM((B * S, D), jnp.float32)],   # residual stream, VMEM-resident
        compiler_params=pltpu.CompilerParams(
            dimension_semantics=("arbitrary",),                 # layer axis carries state
            vmem_limit_bytes=32 * 1024 * 1024,                  # headroom for weight
        ),                                                      #   double-buffering (v5e-v7x safe)
    )(*args)
    # TODO(synk): for large S, replace the in-kernel full [S,S] score tiles with a flash-style
    # online-softmax loop over key tiles (not needed at S=8); for large B add a "parallel" batch
    # grid axis in front of the layer axis for megacore sharding on v7x.
    return out.reshape(B, S, Vpad)[:, :, :vocab_size]


# ---------------------------------------------------------------- parameters / embedding (glue)
def positional_encoding(max_len, d_model):
    pos = jnp.arange(max_len, dtype=jnp.float32)[:, None]
    i = jnp.arange(0, d_model, 2, dtype=jnp.float32)
    div = jnp.exp(-jnp.log(10000.0) * i / d_model)
    pe = jnp.zeros((max_len, d_model), jnp.float32)
    pe = pe.at[:, 0::2].set(jnp.sin(pos * div))
    pe = pe.at[:, 1::2].set(jnp.cos(pos * div))
    return pe


def init_params(key, vocab_size, d_model, d_ff, n_blocks, max_len=64):
    vpad = max(128, pl.cdiv(vocab_size, 128) * 128)

    def dense(k, fan_in, fan_out):
        return jax.random.normal(k, (fan_in, fan_out), jnp.float32) * 0.02

    keys = jax.random.split(key, 2 + 6 * n_blocks)
    params = {
        "emb": jax.random.normal(keys[0], (vocab_size, d_model), jnp.float32) * 0.02,
        "pe": positional_encoding(max_len, d_model),
        "lnf_g": jnp.ones((1, d_model), jnp.float32),
        "lnf_b": jnp.zeros((1, d_model), jnp.float32),
    }
    # Output projection padded to a lane-dense (128-multiple) vocab; padded columns get a huge
    # negative bias so log_softmax over the padded width equals log_softmax over the real vocab.
    w_out = jnp.zeros((d_model, vpad), jnp.float32).at[:, :vocab_size].set(
        dense(keys[1], d_model, vocab_size))
    b_out = jnp.full((1, vpad), -1e30, jnp.float32).at[:, :vocab_size].set(0.0)
    params["w_out"] = w_out.astype(jnp.bfloat16)
    params["b_out"] = b_out

    wq, wk, wv, wo, w1, w2 = [], [], [], [], [], []
    for blk in range(n_blocks):
        kq, kk, kv, ko, k1, k2 = (keys[2 + 6 * blk + j] for j in range(6))
        wq.append(dense(kq, d_model, d_model))
        wk.append(dense(kk, d_model, d_model))
        wv.append(dense(kv, d_model, d_model))
        wo.append(dense(ko, d_model, d_model))
        w1.append(dense(k1, d_model, d_ff))
        w2.append(dense(k2, d_ff, d_model))

    # Weights stored bf16 (native MXU path); biases / LN params stay f32.
    params["wq"] = jnp.stack(wq).astype(jnp.bfloat16)
    params["wk"] = jnp.stack(wk).astype(jnp.bfloat16)
    params["wv"] = jnp.stack(wv).astype(jnp.bfloat16)
    params["wo"] = jnp.stack(wo).astype(jnp.bfloat16)
    params["w1"] = jnp.stack(w1).astype(jnp.bfloat16)
    params["w2"] = jnp.stack(w2).astype(jnp.bfloat16)
    zeros_d = jnp.zeros((n_blocks, 1, d_model), jnp.float32)
    ones_d = jnp.ones((n_blocks, 1, d_model), jnp.float32)
    params["bq"] = zeros_d
    params["bk"] = zeros_d
    params["bv"] = zeros_d
    params["bo"] = zeros_d
    params["ln1g"] = ones_d
    params["ln1b"] = zeros_d
    params["ln2g"] = ones_d
    params["ln2b"] = zeros_d
    params["b1"] = jnp.zeros((n_blocks, 1, d_ff), jnp.float32)
    params["b2"] = zeros_d
    return params


# ---------------------------------------------------------------- main
if __name__ == "__main__":
    B, S, D, H, DFF, V, NBLOCKS = 2, 8, 32, 2, 64, 16, 2

    key = jax.random.PRNGKey(0)
    k_param, k_tok = jax.random.split(key)
    params = init_params(k_param, V, D, DFF, NBLOCKS)

    tokens = jax.random.randint(k_tok, (B, S), 0, V, dtype=jnp.int32)
    causal = jnp.tril(jnp.ones((S, S), jnp.float32))
    mask = jnp.broadcast_to(causal, (B, S, S))

    out = full_transformer_forward(tokens, mask, params, n_heads=H, vocab_size=V)
    out = jax.block_until_ready(out)

    assert out.shape == (B, S, V)
    # log_softmax rows must exponentiate to a probability distribution
    row_sums = jnp.sum(jnp.exp(out), axis=-1)
    assert bool(jnp.all(jnp.isfinite(out)))
    assert bool(jnp.all(jnp.abs(row_sums - 1.0) < 1e-3))
    print("KERNEL_OK")
</pallas_src>

<mosaic_0001>
module attributes {stable_mosaic.version = 11 : i64} {
  func.func @_fused_kernel(%arg0: i32, %arg1: memref<16x32xf32, #tpu.memory_space<vmem>>, %arg2: memref<2x8x8xf32, #tpu.memory_space<vmem>>, %arg3: memref<1x32x32xbf16, #tpu.memory_space<vmem>>, %arg4: memref<1x1x32xf32, #tpu.memory_space<vmem>>, %arg5: memref<1x32x32xbf16, #tpu.memory_space<vmem>>, %arg6: memref<1x1x32xf32, #tpu.memory_space<vmem>>, %arg7: memref<1x32x32xbf16, #tpu.memory_space<vmem>>, %arg8: memref<1x1x32xf32, #tpu.memory_space<vmem>>, %arg9: memref<1x32x32xbf16, #tpu.memory_space<vmem>>, %arg10: memref<1x1x32xf32, #tpu.memory_space<vmem>>, %arg11: memref<1x1x32xf32, #tpu.memory_space<vmem>>, %arg12: memref<1x1x32xf32, #tpu.memory_space<vmem>>, %arg13: memref<1x1x32xf32, #tpu.memory_space<vmem>>, %arg14: memref<1x1x32xf32, #tpu.memory_space<vmem>>, %arg15: memref<1x32x64xbf16, #tpu.memory_space<vmem>>, %arg16: memref<1x1x64xf32, #tpu.memory_space<vmem>>, %arg17: memref<1x64x32xbf16, #tpu.memory_space<vmem>>, %arg18: memref<1x1x32xf32, #tpu.memory_space<vmem>>, %arg19: memref<1x32xf32, #tpu.memory_space<vmem>>, %arg20: memref<1x32xf32, #tpu.memory_space<vmem>>, %arg21: memref<32x128xbf16, #tpu.memory_space<vmem>>, %arg22: memref<1x128xf32, #tpu.memory_space<vmem>>, %arg23: memref<16x128xf32, #tpu.memory_space<vmem>>, %arg24: memref<16x32xf32, #tpu.memory_space<vmem>>) attributes {dimension_semantics = [#tpu.dimension_semantics<arbitrary>], iteration_bounds = array<i64: 2>, scalar_prefetch = 0 : i64, scratch_operands = 1 : i64, tpu.core_type = #tpu.core_type<tc>, window_params = [{pipeline_mode = #tpu.pipeline_mode<synchronous>, transform_indices = @transform_0, window_bounds = array<i64: 16, 32>}, {pipeline_mode = #tpu.pipeline_mode<synchronous>, transform_indices = @transform_1, window_bounds = array<i64: 2, 8, 8>}, {transform_indices = @transform_2, window_bounds = array<i64: 1, 32, 32>}, {transform_indices = @transform_3, window_bounds = array<i64: 1, 1, 32>}, {transform_indices = @transform_4, window_bounds = array<i64: 1, 32, 32>}, {transform_indices = @transform_5, window_bounds = array<i64: 1, 1, 32>}, {transform_indices = @transform_6, window_bounds = array<i64: 1, 32, 32>}, {transform_indices = @transform_7, window_bounds = array<i64: 1, 1, 32>}, {transform_indices = @transform_8, window_bounds = array<i64: 1, 32, 32>}, {transform_indices = @transform_9, window_bounds = array<i64: 1, 1, 32>}, {transform_indices = @transform_10, window_bounds = array<i64: 1, 1, 32>}, {transform_indices = @transform_11, window_bounds = array<i64: 1, 1, 32>}, {transform_indices = @transform_12, window_bounds = array<i64: 1, 1, 32>}, {transform_indices = @transform_13, window_bounds = array<i64: 1, 1, 32>}, {transform_indices = @transform_14, window_bounds = array<i64: 1, 32, 64>}, {transform_indices = @transform_15, window_bounds = array<i64: 1, 1, 64>}, {transform_indices = @transform_16, window_bounds = array<i64: 1, 64, 32>}, {transform_indices = @transform_17, window_bounds = array<i64: 1, 1, 32>}, {pipeline_mode = #tpu.pipeline_mode<synchronous>, transform_indices = @transform_18, window_bounds = array<i64: 1, 32>}, {pipeline_mode = #tpu.pipeline_mode<synchronous>, transform_indices = @transform_19, window_bounds = array<i64: 1, 32>}, {pipeline_mode = #tpu.pipeline_mode<synchronous>, transform_indices = @transform_20, window_bounds = array<i64: 32, 128>}, {pipeline_mode = #tpu.pipeline_mode<synchronous>, transform_indices = @transform_21, window_bounds = array<i64: 1, 128>}, {pipeline_mode = #tpu.pipeline_mode<synchronous>, transform_indices = @transform_22, window_bounds = array<i64: 16, 128>}]} {
    %c0_i32 = arith.constant 0 : i32
    %0 = arith.cmpi eq, %arg0, %c0_i32 : i32
    %1 = arith.extui %0 : i1 to i32
    %c0_i32_0 = arith.constant 0 : i32
    %2 = arith.cmpi ne, %1, %c0_i32_0 : i32
    scf.if %2 {
      %c0_83 = arith.constant 0 : index
      %c0_84 = arith.constant 0 : index
      %162 = vector.load %arg1[%c0_83, %c0_84] : memref<16x32xf32, #tpu.memory_space<vmem>>, vector<16x32xf32>
      %c0_85 = arith.constant 0 : index
      %c0_86 = arith.constant 0 : index
      %163 = vector.load %arg24[%c0_85, %c0_86] : memref<16x32xf32, #tpu.memory_space<vmem>>, vector<16x32xf32>
      tpu.vector_store %arg24[%c0_85, %c0_86], %162 {strides = array<i32>} : memref<16x32xf32, #tpu.memory_space<vmem>>, vector<16x32xf32>,
    } else {
    }
    %c0 = arith.constant 0 : index
    %c0_1 = arith.constant 0 : index
    %3 = vector.load %arg24[%c0, %c0_1] : memref<16x32xf32, #tpu.memory_space<vmem>>, vector<16x32xf32>
    %c0_2 = arith.constant 0 : index
    %c0_3 = arith.constant 0 : index
    %c0_4 = arith.constant 0 : index
    %4 = vector.load %arg2[%c0_2, %c0_3, %c0_4] : memref<2x8x8xf32, #tpu.memory_space<vmem>>, vector<2x8x8xf32>
    %c0_5 = arith.constant 0 : index
    %c0_6 = arith.constant 0 : index
    %c0_7 = arith.constant 0 : index
    %5 = vector.load %arg11[%c0_5, %c0_6, %c0_7] : memref<1x1x32xf32, #tpu.memory_space<vmem>>, vector<1x1x32xf32>
    %6 = vector.shape_cast %5 : vector<1x1x32xf32> to vector<1x32xf32>
    %c0_8 = arith.constant 0 : index
    %c0_9 = arith.constant 0 : index
    %c0_10 = arith.constant 0 : index
    %7 = vector.load %arg12[%c0_8, %c0_9, %c0_10] : memref<1x1x32xf32, #tpu.memory_space<vmem>>, vector<1x1x32xf32>
    %8 = vector.shape_cast %7 : vector<1x1x32xf32> to vector<1x32xf32>
    %cst = arith.constant dense<0.000000e+00> : vector<16xf32>
    %9 = vector.multi_reduction <add>, %3, %cst [1] : vector<16x32xf32> to vector<16xf32>
    %10 = vector.shape_cast %9 : vector<16xf32> to vector<16x1xf32>
    %cst_11 = arith.constant 3.200000e+01 : f32
    %11 = vector.broadcast %cst_11 : f32 to vector<16x1xf32>
    %12 = arith.divf %10, %11 : vector<16x1xf32>
    %13 = vector.broadcast %12 : vector<16x1xf32> to vector<16x32xf32>
    %14 = arith.subf %3, %13 : vector<16x32xf32>
    %15 = arith.mulf %14, %14 : vector<16x32xf32>
    %cst_12 = arith.constant dense<0.000000e+00> : vector<16xf32>
    %16 = vector.multi_reduction <add>, %15, %cst_12 [1] : vector<16x32xf32> to vector<16xf32>
    %17 = vector.shape_cast %16 : vector<16xf32> to vector<16x1xf32>
    %cst_13 = arith.constant 3.200000e+01 : f32
    %18 = vector.broadcast %cst_13 : f32 to vector<16x1xf32>
    %19 = arith.divf %17, %18 : vector<16x1xf32>
    %20 = vector.broadcast %12 : vector<16x1xf32> to vector<16x32xf32>
    %21 = arith.subf %3, %20 : vector<16x32xf32>
    %cst_14 = arith.constant 9.99999974E-6 : f32
    %22 = vector.broadcast %cst_14 : f32 to vector<16x1xf32>
    %23 = arith.addf %19, %22 : vector<16x1xf32>
    %24 = math.rsqrt %23 : vector<16x1xf32>
    %25 = vector.broadcast %24 : vector<16x1xf32> to vector<16x32xf32>
    %26 = arith.mulf %21, %25 : vector<16x32xf32>
    %27 = vector.broadcast %6 : vector<1x32xf32> to vector<16x32xf32>
    %28 = arith.mulf %26, %27 : vector<16x32xf32>
    %29 = vector.broadcast %8 : vector<1x32xf32> to vector<16x32xf32>
    %30 = arith.addf %28, %29 : vector<16x32xf32>
    %31 = arith.truncf %30 : vector<16x32xf32> to vector<16x32xbf16>
    %c0_15 = arith.constant 0 : index
    %c0_16 = arith.constant 0 : index
    %c0_17 = arith.constant 0 : index
    %32 = vector.load %arg3[%c0_15, %c0_16, %c0_17] : memref<1x32x32xbf16, #tpu.memory_space<vmem>>, vector<1x32x32xbf16>
    %33 = vector.shape_cast %32 : vector<1x32x32xbf16> to vector<32x32xbf16>
    %cst_18 = arith.constant dense<0.000000e+00> : vector<16x32xf32>
    %34 = tpu.matmul %31, %33, %cst_18 {dimension_numbers = #tpu.dot_dimension_numbers<[1], [0], [0], [1], [0, 0, 1, 1], [], []>} : vector<16x32xbf16>, vector<32x32xbf16>, vector<16x32xf32> -> vector<16x32xf32>
    %c0_19 = arith.constant 0 : index
    %c0_20 = arith.constant 0 : index
    %c0_21 = arith.constant 0 : index
    %35 = vector.load %arg4[%c0_19, %c0_20, %c0_21] : memref<1x1x32xf32, #tpu.memory_space<vmem>>, vector<1x1x32xf32>
    %36 = vector.shape_cast %35 : vector<1x1x32xf32> to vector<1x32xf32>
    %37 = vector.broadcast %36 : vector<1x32xf32> to vector<16x32xf32>
    %38 = arith.addf %34, %37 : vector<16x32xf32>
    %c0_22 = arith.constant 0 : index
    %c0_23 = arith.constant 0 : index
    %c0_24 = arith.constant 0 : index
    %39 = vector.load %arg5[%c0_22, %c0_23, %c0_24] : memref<1x32x32xbf16, #tpu.memory_space<vmem>>, vector<1x32x32xbf16>
    %40 = vector.shape_cast %39 : vector<1x32x32xbf16> to vector<32x32xbf16>
    %cst_25 = arith.constant dense<0.000000e+00> : vector<16x32xf32>
    %41 = tpu.matmul %31, %40, %cst_25 {dimension_numbers = #tpu.dot_dimension_numbers<[1], [0], [0], [1], [0, 0, 1, 1], [], []>} : vector<16x32xbf16>, vector<32x32xbf16>, vector<16x32xf32> -> vector<16x32xf32>
    %c0_26 = arith.constant 0 : index
    %c0_27 = arith.constant 0 : index
    %c0_28 = arith.constant 0 : index
    %42 = vector.load %arg6[%c0_26, %c0_27, %c0_28] : memref<1x1x32xf32, #tpu.memory_space<vmem>>, vector<1x1x32xf32>
    %43 = vector.shape_cast %42 : vector<1x1x32xf32> to vector<1x32xf32>
    %44 = vector.broadcast %43 : vector<1x32xf32> to vector<16x32xf32>
    %45 = arith.addf %41, %44 : vector<16x32xf32>
    %c0_29 = arith.constant 0 : index
    %c0_30 = arith.constant 0 : index
    %c0_31 = arith.constant 0 : index
    %46 = vector.load %arg7[%c0_29, %c0_30, %c0_31] : memref<1x32x32xbf16, #tpu.memory_space<vmem>>, vector<1x32x32xbf16>
    %47 = vector.shape_cast %46 : vector<1x32x32xbf16> to vector<32x32xbf16>
    %cst_32 = arith.constant dense<0.000000e+00> : vector<16x32xf32>
    %48 = tpu.matmul %31, %47, %cst_32 {dimension_numbers = #tpu.dot_dimension_numbers<[1], [0], [0], [1], [0, 0, 1, 1], [], []>} : vector<16x32xbf16>, vector<32x32xbf16>, vector<16x32xf32> -> vector<16x32xf32>
    %c0_33 = arith.constant 0 : index
    %c0_34 = arith.constant 0 : index
    %c0_35 = arith.constant 0 : index
    %49 = vector.load %arg8[%c0_33, %c0_34, %c0_35] : memref<1x1x32xf32, #tpu.memory_space<vmem>>, vector<1x1x32xf32>
    %50 = vector.shape_cast %49 : vector<1x1x32xf32> to vector<1x32xf32>
    %51 = vector.broadcast %50 : vector<1x32xf32> to vector<16x32xf32>
    %52 = arith.addf %48, %51 : vector<16x32xf32>
    %cst_36 = arith.constant 2.500000e-01 : f32
    %53 = vector.broadcast %cst_36 : f32 to vector<16x32xf32>
    %54 = arith.mulf %38, %53 : vector<16x32xf32>
    %55 = vector.shape_cast %54 : vector<16x32xf32> to vector<2x8x32xf32>
    %56 = arith.truncf %55 : vector<2x8x32xf32> to vector<2x8x32xbf16>
    %57 = vector.shape_cast %45 : vector<16x32xf32> to vector<2x8x32xf32>
    %58 = arith.truncf %57 : vector<2x8x32xf32> to vector<2x8x32xbf16>
    %59 = vector.shape_cast %52 : vector<16x32xf32> to vector<2x8x32xf32>
    %60 = arith.truncf %59 : vector<2x8x32xf32> to vector<2x8x32xbf16>
    %c0_37 = arith.constant 0 : index
    %c0_38 = arith.constant 0 : index
    %c0_39 = arith.constant 0 : index
    %61 = vector.load %arg9[%c0_37, %c0_38, %c0_39] : memref<1x32x32xbf16, #tpu.memory_space<vmem>>, vector<1x32x32xbf16>
    %62 = vector.shape_cast %61 : vector<1x32x32xbf16> to vector<32x32xbf16>
    %cst_40 = arith.constant 0.000000e+00 : f32
    %63 = vector.broadcast %cst_40 : f32 to vector<16x32xf32>
    %64 = vector.extract_strided_slice %56 {offsets = [0, 0, 0], sizes = [2, 8, 16], strides = [1, 1, 1]} : vector<2x8x32xbf16> to vector<2x8x16xbf16>
    %65 = vector.extract_strided_slice %58 {offsets = [0, 0, 0], sizes = [2, 8, 16], strides = [1, 1, 1]} : vector<2x8x32xbf16> to vector<2x8x16xbf16>
    "tpu.trace_start"() <{level = 10 : i32, message = "bqd,bkd->bqk"}> : () -> ()
    %cst_41 = arith.constant dense<0.000000e+00> : vector<2x8x8xf32>
    %66 = tpu.matmul %64, %65, %cst_41 {dimension_numbers = #tpu.dot_dimension_numbers<[2], [2], [1], [1], [0, 0, 0, 1, 1, 1], [0], [0]>} : vector<2x8x16xbf16>, vector<2x8x16xbf16>, vector<2x8x8xf32> -> vector<2x8x8xf32>
    "tpu.trace_stop"() : () -> ()
    %67 = arith.addf %66, %4 : vector<2x8x8xf32>
    %cst_42 = arith.constant dense<0xFF800000> : vector<2x8xf32>
    %68 = vector.multi_reduction <maximumf>, %67, %cst_42 [2] : vector<2x8x8xf32> to vector<2x8xf32>
    %69 = vector.shape_cast %68 : vector<2x8xf32> to vector<2x8x1xf32>
    %70 = vector.broadcast %69 : vector<2x8x1xf32> to vector<2x8x8xf32>
    %71 = arith.subf %67, %70 : vector<2x8x8xf32>
    %72 = math.exp %71 : vector<2x8x8xf32>
    %cst_43 = arith.constant dense<0.000000e+00> : vector<2x8xf32>
    %73 = vector.multi_reduction <add>, %72, %cst_43 [2] : vector<2x8x8xf32> to vector<2x8xf32>
    %74 = vector.shape_cast %73 : vector<2x8xf32> to vector<2x8x1xf32>
    %75 = tpu.reciprocal %74 {approx = true} : vector<2x8x1xf32> -> vector<2x8x1xf32>
    %76 = vector.broadcast %75 : vector<2x8x1xf32> to vector<2x8x8xf32>
    %77 = arith.mulf %72, %76 : vector<2x8x8xf32>
    %78 = arith.truncf %77 : vector<2x8x8xf32> to vector<2x8x8xbf16>
    %79 = vector.extract_strided_slice %60 {offsets = [0, 0, 0], sizes = [2, 8, 16], strides = [1, 1, 1]} : vector<2x8x32xbf16> to vector<2x8x16xbf16>
    "tpu.trace_start"() <{level = 10 : i32, message = "bqk,bkd->bqd"}> : () -> ()
    %cst_44 = arith.constant dense<0.000000e+00> : vector<2x8x16xf32>
    %80 = tpu.matmul %78, %79, %cst_44 {dimension_numbers = #tpu.dot_dimension_numbers<[2], [1], [1], [2], [0, 0, 0, 1, 1, 2], [0], [0]>} : vector<2x8x8xbf16>, vector<2x8x16xbf16>, vector<2x8x16xf32> -> vector<2x8x16xf32>
    "tpu.trace_stop"() : () -> ()
    %81 = vector.shape_cast %80 : vector<2x8x16xf32> to vector<16x16xf32>
    %82 = arith.truncf %81 : vector<16x16xf32> to vector<16x16xbf16>
    %83 = vector.extract_strided_slice %62 {offsets = [0, 0], sizes = [16, 32], strides = [1, 1]} : vector<32x32xbf16> to vector<16x32xbf16>
    %cst_45 = arith.constant dense<0.000000e+00> : vector<16x32xf32>
    %84 = tpu.matmul %82, %83, %cst_45 {dimension_numbers = #tpu.dot_dimension_numbers<[1], [0], [0], [1], [0, 0, 1, 1], [], []>} : vector<16x16xbf16>, vector<16x32xbf16>, vector<16x32xf32> -> vector<16x32xf32>
    %85 = arith.addf %63, %84 : vector<16x32xf32>
    %86 = vector.extract_strided_slice %56 {offsets = [0, 0, 16], sizes = [2, 8, 16], strides = [1, 1, 1]} : vector<2x8x32xbf16> to vector<2x8x16xbf16>
    %87 = vector.extract_strided_slice %58 {offsets = [0, 0, 16], sizes = [2, 8, 16], strides = [1, 1, 1]} : vector<2x8x32xbf16> to vector<2x8x16xbf16>
    "tpu.trace_start"() <{level = 10 : i32, message = "bqd,bkd->bqk"}> : () -> ()
    %cst_46 = arith.constant dense<0.000000e+00> : vector<2x8x8xf32>
    %88 = tpu.matmul %86, %87, %cst_46 {dimension_numbers = #tpu.dot_dimension_numbers<[2], [2], [1], [1], [0, 0, 0, 1, 1, 1], [0], [0]>} : vector<2x8x16xbf16>, vector<2x8x16xbf16>, vector<2x8x8xf32> -> vector<2x8x8xf32>
    "tpu.trace_stop"() : () -> ()
    %89 = arith.addf %88, %4 : vector<2x8x8xf32>
    %cst_47 = arith.constant dense<0xFF800000> : vector<2x8xf32>
    %90 = vector.multi_reduction <maximumf>, %89, %cst_47 [2] : vector<2x8x8xf32> to vector<2x8xf32>
    %91 = vector.shape_cast %90 : vector<2x8xf32> to vector<2x8x1xf32>
    %92 = vector.broadcast %91 : vector<2x8x1xf32> to vector<2x8x8xf32>
    %93 = arith.subf %89, %92 : vector<2x8x8xf32>
    %94 = math.exp %93 : vector<2x8x8xf32>
    %cst_48 = arith.constant dense<0.000000e+00> : vector<2x8xf32>
    %95 = vector.multi_reduction <add>, %94, %cst_48 [2] : vector<2x8x8xf32> to vector<2x8xf32>
    %96 = vector.shape_cast %95 : vector<2x8xf32> to vector<2x8x1xf32>
    %97 = tpu.reciprocal %96 {approx = true} : vector<2x8x1xf32> -> vector<2x8x1xf32>
    %98 = vector.broadcast %97 : vector<2x8x1xf32> to vector<2x8x8xf32>
    %99 = arith.mulf %94, %98 : vector<2x8x8xf32>
    %100 = arith.truncf %99 : vector<2x8x8xf32> to vector<2x8x8xbf16>
    %101 = vector.extract_strided_slice %60 {offsets = [0, 0, 16], sizes = [2, 8, 16], strides = [1, 1, 1]} : vector<2x8x32xbf16> to vector<2x8x16xbf16>
    "tpu.trace_start"() <{level = 10 : i32, message = "bqk,bkd->bqd"}> : () -> ()
    %cst_49 = arith.constant dense<0.000000e+00> : vector<2x8x16xf32>
    %102 = tpu.matmul %100, %101, %cst_49 {dimension_numbers = #tpu.dot_dimension_numbers<[2], [1], [1], [2], [0, 0, 0, 1, 1, 2], [0], [0]>} : vector<2x8x8xbf16>, vector<2x8x16xbf16>, vector<2x8x16xf32> -> vector<2x8x16xf32>
    "tpu.trace_stop"() : () -> ()
    %103 = vector.shape_cast %102 : vector<2x8x16xf32> to vector<16x16xf32>
    %104 = arith.truncf %103 : vector<16x16xf32> to vector<16x16xbf16>
    %105 = vector.extract_strided_slice %62 {offsets = [16, 0], sizes = [16, 32], strides = [1, 1]} : vector<32x32xbf16> to vector<16x32xbf16>
    %cst_50 = arith.constant dense<0.000000e+00> : vector<16x32xf32>
    %106 = tpu.matmul %104, %105, %cst_50 {dimension_numbers = #tpu.dot_dimension_numbers<[1], [0], [0], [1], [0, 0, 1, 1], [], []>} : vector<16x16xbf16>, vector<16x32xbf16>, vector<16x32xf32> -> vector<16x32xf32>
    %107 = arith.addf %85, %106 : vector<16x32xf32>
    %108 = arith.addf %3, %107 : vector<16x32xf32>
    %c0_51 = arith.constant 0 : index
    %c0_52 = arith.constant 0 : index
    %c0_53 = arith.constant 0 : index
    %109 = vector.load %arg10[%c0_51, %c0_52, %c0_53] : memref<1x1x32xf32, #tpu.memory_space<vmem>>, vector<1x1x32xf32>
    %110 = vector.shape_cast %109 : vector<1x1x32xf32> to vector<1x32xf32>
    %111 = vector.broadcast %110 : vector<1x32xf32> to vector<16x32xf32>
    %112 = arith.addf %108, %111 : vector<16x32xf32>
    %c0_54 = arith.constant 0 : index
    %c0_55 = arith.constant 0 : index
    %c0_56 = arith.constant 0 : index
    %113 = vector.load %arg13[%c0_54, %c0_55, %c0_56] : memref<1x1x32xf32, #tpu.memory_space<vmem>>, vector<1x1x32xf32>
    %114 = vector.shape_cast %113 : vector<1x1x32xf32> to vector<1x32xf32>
    %c0_57 = arith.constant 0 : index
    %c0_58 = arith.constant 0 : index
    %c0_59 = arith.constant 0 : index
    %115 = vector.load %arg14[%c0_57, %c0_58, %c0_59] : memref<1x1x32xf32, #tpu.memory_space<vmem>>, vector<1x1x32xf32>
    %116 = vector.shape_cast %115 : vector<1x1x32xf32> to vector<1x32xf32>
    %cst_60 = arith.constant dense<0.000000e+00> : vector<16xf32>
    %117 = vector.multi_reduction <add>, %112, %cst_60 [1] : vector<16x32xf32> to vector<16xf32>
    %118 = vector.shape_cast %117 : vector<16xf32> to vector<16x1xf32>
    %cst_61 = arith.constant 3.200000e+01 : f32
    %119 = vector.broadcast %cst_61 : f32 to vector<16x1xf32>
    %120 = arith.divf %118, %119 : vector<16x1xf32>
    %121 = vector.broadcast %120 : vector<16x1xf32> to vector<16x32xf32>
    %122 = arith.subf %112, %121 : vector<16x32xf32>
    %123 = arith.mulf %122, %122 : vector<16x32xf32>
    %cst_62 = arith.constant dense<0.000000e+00> : vector<16xf32>
    %124 = vector.multi_reduction <add>, %123, %cst_62 [1] : vector<16x32xf32> to vector<16xf32>
    %125 = vector.shape_cast %124 : vector<16xf32> to vector<16x1xf32>
    %cst_63 = arith.constant 3.200000e+01 : f32
    %126 = vector.broadcast %cst_63 : f32 to vector<16x1xf32>
    %127 = arith.divf %125, %126 : vector<16x1xf32>
    %128 = vector.broadcast %120 : vector<16x1xf32> to vector<16x32xf32>
    %129 = arith.subf %112, %128 : vector<16x32xf32>
    %cst_64 = arith.constant 9.99999974E-6 : f32
    %130 = vector.broadcast %cst_64 : f32 to vector<16x1xf32>
    %131 = arith.addf %127, %130 : vector<16x1xf32>
    %132 = math.rsqrt %131 : vector<16x1xf32>
    %133 = vector.broadcast %132 : vector<16x1xf32> to vector<16x32xf32>
    %134 = arith.mulf %129, %133 : vector<16x32xf32>
    %135 = vector.broadcast %114 : vector<1x32xf32> to vector<16x32xf32>
    %136 = arith.mulf %134, %135 : vector<16x32xf32>
    %137 = vector.broadcast %116 : vector<1x32xf32> to vector<16x32xf32>
    %138 = arith.addf %136, %137 : vector<16x32xf32>
    %139 = arith.truncf %138 : vector<16x32xf32> to vector<16x32xbf16>
    %c0_65 = arith.constant 0 : index
    %c0_66 = arith.constant 0 : index
    %c0_67 = arith.constant 0 : index
    %140 = vector.load %arg15[%c0_65, %c0_66, %c0_67] : memref<1x32x64xbf16, #tpu.memory_space<vmem>>, vector<1x32x64xbf16>
    %141 = vector.shape_cast %140 : vector<1x32x64xbf16> to vector<32x64xbf16>
    %cst_68 = arith.constant dense<0.000000e+00> : vector<16x64xf32>
    %142 = tpu.matmul %139, %141, %cst_68 {dimension_numbers = #tpu.dot_dimension_numbers<[1], [0], [0], [1], [0, 0, 1, 1], [], []>} : vector<16x32xbf16>, vector<32x64xbf16>, vector<16x64xf32> -> vector<16x64xf32>
    %c0_69 = arith.constant 0 : index
    %c0_70 = arith.constant 0 : index
    %c0_71 = arith.constant 0 : index
    %143 = vector.load %arg16[%c0_69, %c0_70, %c0_71] : memref<1x1x64xf32, #tpu.memory_space<vmem>>, vector<1x1x64xf32>
    %144 = vector.shape_cast %143 : vector<1x1x64xf32> to vector<1x64xf32>
    %145 = vector.broadcast %144 : vector<1x64xf32> to vector<16x64xf32>
    %146 = arith.addf %142, %145 : vector<16x64xf32>
    %cst_72 = arith.constant 0.000000e+00 : f32
    %147 = vector.broadcast %cst_72 : f32 to vector<16x64xf32>
    %148 = arith.maximumf %146, %147 : vector<16x64xf32>
    %149 = arith.truncf %148 : vector<16x64xf32> to vector<16x64xbf16>
    %c0_73 = arith.constant 0 : index
    %c0_74 = arith.constant 0 : index
    %c0_75 = arith.constant 0 : index
    %150 = vector.load %arg17[%c0_73, %c0_74, %c0_75] : memref<1x64x32xbf16, #tpu.memory_space<vmem>>, vector<1x64x32xbf16>
    %151 = vector.shape_cast %150 : vector<1x64x32xbf16> to vector<64x32xbf16>
    %cst_76 = arith.constant dense<0.000000e+00> : vector<16x32xf32>
    %152 = tpu.matmul %149, %151, %cst_76 {dimension_numbers = #tpu.dot_dimension_numbers<[1], [0], [0], [1], [0, 0, 1, 1], [], []>} : vector<16x64xbf16>, vector<64x32xbf16>, vector<16x32xf32> -> vector<16x32xf32>
    %c0_77 = arith.constant 0 : index
    %c0_78 = arith.constant 0 : index
    %c0_79 = arith.constant 0 : index
    %153 = vector.load %arg18[%c0_77, %c0_78, %c0_79] : memref<1x1x32xf32, #tpu.memory_space<vmem>>, vector<1x1x32xf32>
    %154 = vector.shape_cast %153 : vector<1x1x32xf32> to vector<1x32xf32>
    %155 = vector.broadcast %154 : vector<1x32xf32> to vector<16x32xf32>
    %156 = arith.addf %152, %155 : vector<16x32xf32>
    %157 = arith.addf %112, %156 : vector<16x32xf32>
    %c0_80 = arith.constant 0 : index
    %c0_81 = arith.constant 0 : index
    %158 = vector.load %arg24[%c0_80, %c0_81] : memref<16x32xf32, #tpu.memory_space<vmem>>, vector<16x32xf32>
    tpu.vector_store %arg24[%c0_80, %c0_81], %157 {strides = array<i32>} : memref<16x32xf32, #tpu.memory_space<vmem>>, vector<16x32xf32>,
    %c1_i32 = arith.constant 1 : i32
    %159 = arith.cmpi eq, %arg0, %c1_i32 : i32
    %160 = arith.extui %159 : i1 to i32
    %c0_i32_82 = arith.constant 0 : i32
    %161 = arith.cmpi ne, %160, %c0_i32_82 : i32
    scf.if %161 {
      %c0_83 = arith.constant 0 : index
      %c0_84 = arith.constant 0 : index
      %162 = vector.load %arg19[%c0_83, %c0_84] : memref<1x32xf32, #tpu.memory_space<vmem>>, vector<1x32xf32>
      %c0_85 = arith.constant 0 : index
      %c0_86 = arith.constant 0 : index
      %163 = vector.load %arg20[%c0_85, %c0_86] : memref<1x32xf32, #tpu.memory_space<vmem>>, vector<1x32xf32>
      %cst_87 = arith.constant dense<0.000000e+00> : vector<16xf32>
      %164 = vector.multi_reduction <add>, %157, %cst_87 [1] : vector<16x32xf32> to vector<16xf32>
      %165 = vector.shape_cast %164 : vector<16xf32> to vector<16x1xf32>
      %cst_88 = arith.constant 3.200000e+01 : f32
      %166 = vector.broadcast %cst_88 : f32 to vector<16x1xf32>
      %167 = arith.divf %165, %166 : vector<16x1xf32>
      %168 = vector.broadcast %167 : vector<16x1xf32> to vector<16x32xf32>
      %169 = arith.subf %157, %168 : vector<16x32xf32>
      %170 = arith.mulf %169, %169 : vector<16x32xf32>
      %cst_89 = arith.constant dense<0.000000e+00> : vector<16xf32>
      %171 = vector.multi_reduction <add>, %170, %cst_89 [1] : vector<16x32xf32> to vector<16xf32>
      %172 = vector.shape_cast %171 : vector<16xf32> to vector<16x1xf32>
      %cst_90 = arith.constant 3.200000e+01 : f32
      %173 = vector.broadcast %cst_90 : f32 to vector<16x1xf32>
      %174 = arith.divf %172, %173 : vector<16x1xf32>
      %175 = vector.broadcast %167 : vector<16x1xf32> to vector<16x32xf32>
      %176 = arith.subf %157, %175 : vector<16x32xf32>
      %cst_91 = arith.constant 9.99999974E-6 : f32
      %177 = vector.broadcast %cst_91 : f32 to vector<16x1xf32>
      %178 = arith.addf %174, %177 : vector<16x1xf32>
      %179 = math.rsqrt %178 : vector<16x1xf32>
      %180 = vector.broadcast %179 : vector<16x1xf32> to vector<16x32xf32>
      %181 = arith.mulf %176, %180 : vector<16x32xf32>
      %182 = vector.broadcast %162 : vector<1x32xf32> to vector<16x32xf32>
      %183 = arith.mulf %181, %182 : vector<16x32xf32>
      %184 = vector.broadcast %163 : vector<1x32xf32> to vector<16x32xf32>
      %185 = arith.addf %183, %184 : vector<16x32xf32>
      %186 = arith.truncf %185 : vector<16x32xf32> to vector<16x32xbf16>
      %c0_92 = arith.constant 0 : index
      %c0_93 = arith.constant 0 : index
      %187 = vector.load %arg21[%c0_92, %c0_93] : memref<32x128xbf16, #tpu.memory_space<vmem>>, vector<32x128xbf16>
      %cst_94 = arith.constant dense<0.000000e+00> : vector<16x128xf32>
      %188 = tpu.matmul %186, %187, %cst_94 {dimension_numbers = #tpu.dot_dimension_numbers<[1], [0], [0], [1], [0, 0, 1, 1], [], []>} : vector<16x32xbf16>, vector<32x128xbf16>, vector<16x128xf32> -> vector<16x128xf32>
      %c0_95 = arith.constant 0 : index
      %c0_96 = arith.constant 0 : index
      %189 = vector.load %arg22[%c0_95, %c0_96] : memref<1x128xf32, #tpu.memory_space<vmem>>, vector<1x128xf32>
      %190 = vector.broadcast %189 : vector<1x128xf32> to vector<16x128xf32>
      %191 = arith.addf %188, %190 : vector<16x128xf32>
      %cst_97 = arith.constant dense<0xFF800000> : vector<16xf32>
      %192 = vector.multi_reduction <maximumf>, %191, %cst_97 [1] : vector<16x128xf32> to vector<16xf32>
      %193 = vector.shape_cast %192 : vector<16xf32> to vector<16x1xf32>
      %194 = vector.broadcast %193 : vector<16x1xf32> to vector<16x128xf32>
      %195 = arith.subf %191, %194 : vector<16x128xf32>
      %196 = math.exp %195 : vector<16x128xf32>
      %cst_98 = arith.constant dense<0.000000e+00> : vector<16xf32>
      %197 = vector.multi_reduction <add>, %196, %cst_98 [1] : vector<16x128xf32> to vector<16xf32>
      %198 = vector.shape_cast %197 : vector<16xf32> to vector<16x1xf32>
      %199 = math.log %198 : vector<16x1xf32>
      %200 = vector.broadcast %199 : vector<16x1xf32> to vector<16x128xf32>
      %201 = arith.subf %195, %200 : vector<16x128xf32>
      %c0_99 = arith.constant 0 : index
      %c0_100 = arith.constant 0 : index
      %202 = vector.load %arg23[%c0_99, %c0_100] : memref<16x128xf32, #tpu.memory_space<vmem>>, vector<16x128xf32>
      tpu.vector_store %arg23[%c0_99, %c0_100], %201 {strides = array<i32>} : memref<16x128xf32, #tpu.memory_space<vmem>>, vector<16x128xf32>,
    } else {
    }
    return
  }
  func.func @transform_0(%arg0: i32) -> (i32, i32) {
    %c0_i32 = arith.constant 0 : i32
    %c0_i32_0 = arith.constant 0 : i32
    %c0_i32_1 = arith.constant 0 : i32
    return %c0_i32, %c0_i32_0 : i32, i32
  }
  func.func @transform_1(%arg0: i32) -> (i32, i32, i32) {
    %c0_i32 = arith.constant 0 : i32
    %c0_i32_0 = arith.constant 0 : i32
    %c0_i32_1 = arith.constant 0 : i32
    %c0_i32_2 = arith.constant 0 : i32
    return %c0_i32, %c0_i32_0, %c0_i32_1 : i32, i32, i32
  }
  func.func @transform_2(%arg0: i32) -> (i32, i32, i32) {
    %c0_i32 = arith.constant 0 : i32
    %c0_i32_0 = arith.constant 0 : i32
    %c0_i32_1 = arith.constant 0 : i32
    return %arg0, %c0_i32, %c0_i32_0 : i32, i32, i32
  }
  func.func @transform_3(%arg0: i32) -> (i32, i32, i32) {
    %c0_i32 = arith.constant 0 : i32
    %c0_i32_0 = arith.constant 0 : i32
    %c0_i32_1 = arith.constant 0 : i32
    return %arg0, %c0_i32, %c0_i32_0 : i32, i32, i32
  }
  func.func @transform_4(%arg0: i32) -> (i32, i32, i32) {
    %c0_i32 = arith.constant 0 : i32
    %c0_i32_0 = arith.constant 0 : i32
    %c0_i32_1 = arith.constant 0 : i32
    return %arg0, %c0_i32, %c0_i32_0 : i32, i32, i32
  }
  func.func @transform_5(%arg0: i32) -> (i32, i32, i32) {
    %c0_i32 = arith.constant 0 : i32
    %c0_i32_0 = arith.constant 0 : i32
    %c0_i32_1 = arith.constant 0 : i32
    return %arg0, %c0_i32, %c0_i32_0 : i32, i32, i32
  }
  func.func @transform_6(%arg0: i32) -> (i32, i32, i32) {
    %c0_i32 = arith.constant 0 : i32
    %c0_i32_0 = arith.constant 0 : i32
    %c0_i32_1 = arith.constant 0 : i32
    return %arg0, %c0_i32, %c0_i32_0 : i32, i32, i32
  }
  func.func @transform_7(%arg0: i32) -> (i32, i32, i32) {
    %c0_i32 = arith.constant 0 : i32
    %c0_i32_0 = arith.constant 0 : i32
    %c0_i32_1 = arith.constant 0 : i32
    return %arg0, %c0_i32, %c0_i32_0 : i32, i32, i32
  }
  func.func @transform_8(%arg0: i32) -> (i32, i32, i32) {
    %c0_i32 = arith.constant 0 : i32
    %c0_i32_0 = arith.constant 0 : i32
    %c0_i32_1 = arith.constant 0 : i32
    return %arg0, %c0_i32, %c0_i32_0 : i32, i32, i32
  }
  func.func @transform_9(%arg0: i32) -> (i32, i32, i32) {
    %c0_i32 = arith.constant 0 : i32
    %c0_i32_0 = arith.constant 0 : i32
    %c0_i32_1 = arith.constant 0 : i32
    return %arg0, %c0_i32, %c0_i32_0 : i32, i32, i32
  }
  func.func @transform_10(%arg0: i32) -> (i32, i32, i32) {
    %c0_i32 = arith.constant 0 : i32
    %c0_i32_0 = arith.constant 0 : i32
    %c0_i32_1 = arith.constant 0 : i32
    return %arg0, %c0_i32, %c0_i32_0 : i32, i32, i32
  }
  func.func @transform_11(%arg0: i32) -> (i32, i32, i32) {
    %c0_i32 = arith.constant 0 : i32
    %c0_i32_0 = arith.constant 0 : i32
    %c0_i32_1 = arith.constant 0 : i32
    return %arg0, %c0_i32, %c0_i32_0 : i32, i32, i32
  }
  func.func @transform_12(%arg0: i32) -> (i32, i32, i32) {
    %c0_i32 = arith.constant 0 : i32
    %c0_i32_0 = arith.constant 0 : i32
    %c0_i32_1 = arith.constant 0 : i32
    return %arg0, %c0_i32, %c0_i32_0 : i32, i32, i32
  }
  func.func @transform_13(%arg0: i32) -> (i32, i32, i32) {
    %c0_i32 = arith.constant 0 : i32
    %c0_i32_0 = arith.constant 0 : i32
    %c0_i32_1 = arith.constant 0 : i32
    return %arg0, %c0_i32, %c0_i32_0 : i32, i32, i32
  }
  func.func @transform_14(%arg0: i32) -> (i32, i32, i32) {
    %c0_i32 = arith.constant 0 : i32
    %c0_i32_0 = arith.constant 0 : i32
    %c0_i32_1 = arith.constant 0 : i32
    return %arg0, %c0_i32, %c0_i32_0 : i32, i32, i32
  }
  func.func @transform_15(%arg0: i32) -> (i32, i32, i32) {
    %c0_i32 = arith.constant 0 : i32
    %c0_i32_0 = arith.constant 0 : i32
    %c0_i32_1 = arith.constant 0 : i32
    return %arg0, %c0_i32, %c0_i32_0 : i32, i32, i32
  }
  func.func @transform_16(%arg0: i32) -> (i32, i32, i32) {
    %c0_i32 = arith.constant 0 : i32
    %c0_i32_0 = arith.constant 0 : i32
    %c0_i32_1 = arith.constant 0 : i32
    return %arg0, %c0_i32, %c0_i32_0 : i32, i32, i32
  }
  func.func @transform_17(%arg0: i32) -> (i32, i32, i32) {
    %c0_i32 = arith.constant 0 : i32
    %c0_i32_0 = arith.constant 0 : i32
    %c0_i32_1 = arith.constant 0 : i32
    return %arg0, %c0_i32, %c0_i32_0 : i32, i32, i32
  }
  func.func @transform_18(%arg0: i32) -> (i32, i32) {
    %c0_i32 = arith.constant 0 : i32
    %c0_i32_0 = arith.constant 0 : i32
    %c0_i32_1 = arith.constant 0 : i32
    return %c0_i32, %c0_i32_0 : i32, i32
  }
  func.func @transform_19(%arg0: i32) -> (i32, i32) {
    %c0_i32 = arith.constant 0 : i32
    %c0_i32_0 = arith.constant 0 : i32
    %c0_i32_1 = arith.constant 0 : i32
    return %c0_i32, %c0_i32_0 : i32, i32
  }
  func.func @transform_20(%arg0: i32) -> (i32, i32) {
    %c0_i32 = arith.constant 0 : i32
    %c0_i32_0 = arith.constant 0 : i32
    %c0_i32_1 = arith.constant 0 : i32
    return %c0_i32, %c0_i32_0 : i32, i32
  }
  func.func @transform_21(%arg0: i32) -> (i32, i32) {
    %c0_i32 = arith.constant 0 : i32
    %c0_i32_0 = arith.constant 0 : i32
    %c0_i32_1 = arith.constant 0 : i32
    return %c0_i32, %c0_i32_0 : i32, i32
  }
  func.func @transform_22(%arg0: i32) -> (i32, i32) {
    %c0_i32 = arith.constant 0 : i32
    %c0_i32_0 = arith.constant 0 : i32
    %c0_i32_1 = arith.constant 0 : i32
    return %c0_i32, %c0_i32_0 : i32, i32
  }
}

</mosaic_0001>

<llo_original>
// kernel: tpu_custom_call.1
$region0: #{tpu_custom_call.1}
  #allocation0 [shape = 'u32[]', space=smem, size = 0x4, offset = 0x4, fixed_abs, tag = 'smem constant byte address 0x4 - core index']
  #allocation1 [shape = 'u32[144,128]{1,0:T(1,128)}', space=vmem, size = 0x12000, scoped, tag = 'internal scratch']
  #allocation2 [shape = 'f32[16,32]{1,0:T(8,128)}', space=vmem, size = 0x2000, scoped, tag = 'scratch operand']
  %s0 = inlined_call_operand.hbm [shape: f32[16,32], index: 0, kind: input, shape index: {}]
  %s1 = inlined_call_operand.hbm [shape: f32[2,8,8], index: 1, kind: input, shape index: {}]
  %s2 = inlined_call_operand.vmem [shape: bf16[2,32,32], index: 2, kind: input, shape index: {}]
  %s3 = inlined_call_operand.hbm [shape: f32[2,1,32], index: 3, kind: input, shape index: {}]
  %s4 = inlined_call_operand.vmem [shape: bf16[2,32,32], index: 4, kind: input, shape index: {}]
  %s5 = inlined_call_operand.hbm [shape: f32[2,1,32], index: 5, kind: input, shape index: {}]
  %s6 = inlined_call_operand.vmem [shape: bf16[2,32,32], index: 6, kind: input, shape index: {}]
  %s7 = inlined_call_operand.hbm [shape: f32[2,1,32], index: 7, kind: input, shape index: {}]
  %s8 = inlined_call_operand.hbm [shape: bf16[2,32,32], index: 8, kind: input, shape index: {}]
  %s9 = inlined_call_operand.hbm [shape: f32[2,1,32], index: 9, kind: input, shape index: {}]
  %s10 = inlined_call_operand.vmem [shape: f32[2,1,32], index: 10, kind: input, shape index: {}]
  %s11 = inlined_call_operand.vmem [shape: f32[2,1,32], index: 11, kind: input, shape index: {}]
  %s12 = inlined_call_operand.hbm [shape: f32[2,1,32], index: 12, kind: input, shape index: {}]
  %s13 = inlined_call_operand.vmem [shape: f32[2,1,32], index: 13, kind: input, shape index: {}]
  %s14 = inlined_call_operand.hbm [shape: bf16[2,32,64], index: 14, kind: input, shape index: {}]
  %s15 = inlined_call_operand.vmem [shape: f32[2,1,64], index: 15, kind: input, shape index: {}]
  %s16 = inlined_call_operand.vmem [shape: bf16[2,64,32], index: 16, kind: input, shape index: {}]
  %s17 = inlined_call_operand.vmem [shape: f32[2,1,32], index: 17, kind: input, shape index: {}]
  %s18 = inlined_call_operand.vmem [shape: f32[1,32], index: 18, kind: input, shape index: {}]
  %s19 = inlined_call_operand.vmem [shape: f32[1,32], index: 19, kind: input, shape index: {}]
  %s20 = inlined_call_operand.vmem [shape: bf16[32,128], index: 20, kind: input, shape index: {}]
  %s21 = inlined_call_operand.vmem [shape: f32[1,128], index: 21, kind: input, shape index: {}]
  %s22 = inlined_call_operand.hbm [shape: f32[16,128], index: 22, kind: output, shape index: {}]
  %s23 = sld [smem:[#allocation0]]
  $region165: #{tpu_custom_call.1} parent=0
    _
  %s25 = ssub.s32 1, %s23
  %s26 = scalar_select 0, %s25, %s23
  $region1: #{tpu_custom_call.1} parent=0
    #allocation3 [shape = 'u8[8192]{0}', space=vmem, size = 0x2000, scoped, tag = 'input window, operand 0, single buffered']
    #allocation4 [shape = 's32[2]{0}', space=sflag, size = 0x8, scoped, tag = 'scoped memory for tpu_custom_call.1']
    #allocation5 [shape = 's32[2]{0}', space=sflag, size = 0x8, scoped, tag = 'scoped memory for tpu_custom_call.1']
    #allocation6 [shape = 'u8[8192]{0}', space=vmem, size = 0x2000, scoped, tag = 'input window, operand 1, single buffered']
    #allocation7 [shape = 's32[1]{0}', space=sflag, size = 0x4, scoped, tag = 'scoped memory for tpu_custom_call.1']
    #allocation8 [shape = 'u8[1024]{0}', space=vmem, size = 0x400, scoped, tag = 'input window, operand 3']
    #allocation9 [shape = 'u8[1024]{0}', space=vmem, size = 0x400, scoped, tag = 'input window, operand 5']
    #allocation10 [shape = 'u8[1024]{0}', space=vmem, size = 0x400, scoped, tag = 'input window, operand 7']
    #allocation11 [shape = 'u8[16384]{0}', space=vmem, size = 0x4000, scoped, tag = 'input window, operand 8']
    #allocation12 [shape = 'u8[1024]{0}', space=vmem, size = 0x400, scoped, tag = 'input window, operand 9']
    #allocation13 [shape = 'u8[1024]{0}', space=vmem, size = 0x400, scoped, tag = 'input window, operand 12']
    #allocation14 [shape = 'u8[16384]{0}', space=vmem, size = 0x4000, scoped, tag = 'input window, operand 14']
    #allocation15 [shape = 'u8[8192]{0}', space=vmem, size = 0x2000, scoped, tag = 'output window, operand 0, single buffered']
    %27 = vsyncpa [#allocation4], 0
    %28 = vsyncpa [#allocation7], 0
    %29 = vsyncpa [#allocation5], 0
    loop: start=0, step=1, limit=4
    $region2: #{tpu_custom_call.1} parent=1 // loop_pre_header
      _
    $region3: #{tpu_custom_call.1} parent=1 // loop_header
      %s31 = sphi 0, %s35
      %p32 = scmp.ge.s32.totalorder %s31, 4
      %s39 = sphi 0, %s39
      %s41 = sphi 0, %s39
      %s42 = sphi 0, %s41
      %s56 = sphi 0, %s42
      %s60 = sphi 0, %s60
      %s62 = sphi 0, %s60
      %s63 = sphi 0, %s62
      %s77 = sphi 0, %s63
      %s83 = sphi 0, %s85
      %s86 = sphi 0, %s83
      %s87 = sphi 0, %s86
      %s103 = sphi 0, %s87
      %s109 = sphi 0, %s111
      %s112 = sphi 0, %s109
      %s113 = sphi 0, %s112
      %s129 = sphi 0, %s113
      %s135 = sphi 0, %s137
      %s138 = sphi 0, %s135
      %s139 = sphi 0, %s138
      %s155 = sphi 0, %s139
      %s161 = sphi 0, %s163
      %s164 = sphi 0, %s161
      %s165 = sphi 0, %s164
      %s181 = sphi 0, %s165
      %s187 = sphi 0, %s189
      %s190 = sphi 0, %s187
      %s191 = sphi 0, %s190
      %s207 = sphi 0, %s191
      %s213 = sphi 0, %s215
      %s216 = sphi 0, %s213
      %s217 = sphi 0, %s216
      %s233 = sphi 0, %s217
      %s239 = sphi 0, %s241
      %s242 = sphi 0, %s239
      %s243 = sphi 0, %s242
      %s259 = sphi 0, %s243
      %s265 = sphi 0, %s267
      %s268 = sphi 0, %s265
      %s269 = sphi 0, %s268
      %s285 = sphi 0, %s269
      %s291 = sphi 0, %s293
      %s294 = sphi 0, %s291
      %s295 = sphi 0, %s294
      %s311 = sphi 0, %s295
      %s317 = sphi 0, %s319
      %s320 = sphi 0, %s317
      %s321 = sphi 0, %s320
      %s337 = sphi 0, %s321
      %s343 = sphi 0, %s345
      %s346 = sphi 0, %s343
      %s347 = sphi 0, %s346
      %s363 = sphi 0, %s347
      %s369 = sphi 0, %s371
      %s372 = sphi 0, %s369
      %s373 = sphi 0, %s372
      %s389 = sphi 0, %s373
      %s395 = sphi 0, %s397
      %s398 = sphi 0, %s395
      %s399 = sphi 0, %s398
      %s415 = sphi 0, %s399
      %s421 = sphi 0, %s423
      %s424 = sphi 0, %s421
      %s425 = sphi 0, %s424
      %s441 = sphi 0, %s425
      %s447 = sphi 0, %s449
      %s450 = sphi 0, %s447
      %s451 = sphi 0, %s450
      %s467 = sphi 0, %s451
      %s473 = sphi 0, %s475
      %s476 = sphi 0, %s473
      %s477 = sphi 0, %s476
      %s493 = sphi 0, %s477
      %s497 = sphi 0, %s497
      %s499 = sphi 0, %s497
      %s500 = sphi 0, %s499
      %s514 = sphi 0, %s500
      %s518 = sphi 0, %s518
      %s520 = sphi 0, %s518
      %s521 = sphi 0, %s520
      %s535 = sphi 0, %s521
      %s539 = sphi 0, %s539
      %s541 = sphi 0, %s539
      %s542 = sphi 0, %s541
      %s556 = sphi 0, %s542
      %s560 = sphi 0, %s560
      %s562 = sphi 0, %s560
      %s563 = sphi 0, %s562
      %s577 = sphi 0, %s563
      %s581 = sphi 0, %s581
      %s583 = sphi 0, %s581
      %s584 = sphi 0, %s583
      %s598 = sphi 0, %s584
    $region4: #{tpu_custom_call.1} parent=1 // loop_header_branch
      %34 = sbr.rel (%p32) target = $region8
    $region5: #{tpu_custom_call.1} parent=1 // loop_body
      %s36 = ssub.s32 %s31, 1
      %s37 = ssub.s32 %s31, 2
      %s38 = sadd.s32 %s31, 1
      %s40 = sadd.s32 %s39, 1
      %p43 = scmp.eq.s32.totalorder %s31, 1
      %p44 = scmp.ne.s32.totalorder %s39, %s41
      %p45 = scmp.eq.s32.totalorder %s31, 0
      %p46 = por %p44, %p45
      %p47 = scmp.ne.s32.totalorder %s39, %s41
      %p48 = scmp.eq.s32.totalorder %s36, 1
      %p49 = por %p47, %p48
      %p50 = scmp.ne.s32.totalorder %s41, %s42
      %p51 = scmp.eq.s32.totalorder %s36, 0
      %p52 = por %p50, %p51
      %p53 = scmp.ne.s32.totalorder %s41, %s42
      %p54 = scmp.eq.s32.totalorder %s37, 1
      %p55 = por %p53, %p54
      %p57 = scmp.ne.s32.totalorder %s42, %s56
      %p58 = scmp.eq.s32.totalorder %s37, 0
      %p59 = por %p57, %p58
      %s61 = sadd.s32 %s60, 1
      %p64 = scmp.eq.s32.totalorder %s31, 1
      %p65 = scmp.ne.s32.totalorder %s60, %s62
      %p66 = scmp.eq.s32.totalorder %s31, 0
      %p67 = por %p65, %p66
      %p68 = scmp.ne.s32.totalorder %s60, %s62
      %p69 = scmp.eq.s32.totalorder %s36, 1
      %p70 = por %p68, %p69
      %p71 = scmp.ne.s32.totalorder %s62, %s63
      %p72 = scmp.eq.s32.totalorder %s36, 0
      %p73 = por %p71, %p72
      %p74 = scmp.ne.s32.totalorder %s62, %s63
      %p75 = scmp.eq.s32.totalorder %s37, 1
      %p76 = por %p74, %p75
      %p78 = scmp.ne.s32.totalorder %s63, %s77
      %p79 = scmp.eq.s32.totalorder %s37, 0
      %p80 = por %p78, %p79
      %s81 = ssub.s32 %s31, %s38
      %p82 = scmp.eq.s32.totalorder %s81, 0
      %s84 = sadd.s32 %s83, 1
      %s85 = scalar_select %p82, %s83, %s84
      %p88 = pneg %p82
      %p89 = scmp.eq.s32.totalorder %s31, 1
      %p90 = por %p88, %p89
      %p91 = scmp.ne.s32.totalorder %s83, %s86
      %p92 = scmp.eq.s32.totalorder %s31, 0
      %p93 = por %p91, %p92
      %p94 = scmp.ne.s32.totalorder %s83, %s86
      %p95 = scmp.eq.s32.totalorder %s36, 1
      %p96 = por %p94, %p95
      %p97 = scmp.ne.s32.totalorder %s86, %s87
      %p98 = scmp.eq.s32.totalorder %s36, 0
      %p99 = por %p97, %p98
      %p100 = scmp.ne.s32.totalorder %s86, %s87
      %p101 = scmp.eq.s32.totalorder %s37, 1
      %p102 = por %p100, %p101
      %p104 = scmp.ne.s32.totalorder %s87, %s103
      %p105 = scmp.eq.s32.totalorder %s37, 0
      %p106 = por %p104, %p105
      %s107 = ssub.s32 %s31, %s38
      %p108 = scmp.eq.s32.totalorder %s107, 0
      %s110 = sadd.s32 %s109, 1
      %s111 = scalar_select %p108, %s109, %s110
      %p114 = pneg %p108
      %p115 = scmp.eq.s32.totalorder %s31, 1
      %p116 = por %p114, %p115
      %p117 = scmp.ne.s32.totalorder %s109, %s112
      %p118 = scmp.eq.s32.totalorder %s31, 0
      %p119 = por %p117, %p118
      %p120 = scmp.ne.s32.totalorder %s109, %s112
      %p121 = scmp.eq.s32.totalorder %s36, 1
      %p122 = por %p120, %p121
      %p123 = scmp.ne.s32.totalorder %s112, %s113
      %p124 = scmp.eq.s32.totalorder %s36, 0
      %p125 = por %p123, %p124
      %p126 = scmp.ne.s32.totalorder %s112, %s113
      %p127 = scmp.eq.s32.totalorder %s37, 1
      %p128 = por %p126, %p127
      %p130 = scmp.ne.s32.totalorder %s113, %s129
      %p131 = scmp.eq.s32.totalorder %s37, 0
      %p132 = por %p130, %p131
      %s133 = ssub.s32 %s31, %s38
      %p134 = scmp.eq.s32.totalorder %s133, 0
      %s136 = sadd.s32 %s135, 1
      %s137 = scalar_select %p134, %s135, %s136
      %p140 = pneg %p134
      %p141 = scmp.eq.s32.totalorder %s31, 1
      %p142 = por %p140, %p141
      %p143 = scmp.ne.s32.totalorder %s135, %s138
      %p144 = scmp.eq.s32.totalorder %s31, 0
      %p145 = por %p143, %p144
      %p146 = scmp.ne.s32.totalorder %s135, %s138
      %p147 = scmp.eq.s32.totalorder %s36, 1
      %p148 = por %p146, %p147
      %p149 = scmp.ne.s32.totalorder %s138, %s139
      %p150 = scmp.eq.s32.totalorder %s36, 0
      %p151 = por %p149, %p150
      %p152 = scmp.ne.s32.totalorder %s138, %s139
      %p153 = scmp.eq.s32.totalorder %s37, 1
      %p154 = por %p152, %p153
      %p156 = scmp.ne.s32.totalorder %s139, %s155
      %p157 = scmp.eq.s32.totalorder %s37, 0
      %p158 = por %p156, %p157
      %s159 = ssub.s32 %s31, %s38
      %p160 = scmp.eq.s32.totalorder %s159, 0
      %s162 = sadd.s32 %s161, 1
      %s163 = scalar_select %p160, %s161, %s162
      %p166 = pneg %p160
      %p167 = scmp.eq.s32.totalorder %s31, 1
      %p168 = por %p166, %p167
      %p169 = scmp.ne.s32.totalorder %s161, %s164
      %p170 = scmp.eq.s32.totalorder %s31, 0
      %p171 = por %p169, %p170
      %p172 = scmp.ne.s32.totalorder %s161, %s164
      %p173 = scmp.eq.s32.totalorder %s36, 1
      %p174 = por %p172, %p173
      %p175 = scmp.ne.s32.totalorder %s164, %s165
      %p176 = scmp.eq.s32.totalorder %s36, 0
      %p177 = por %p175, %p176
      %p178 = scmp.ne.s32.totalorder %s164, %s165
      %p179 = scmp.eq.s32.totalorder %s37, 1
      %p180 = por %p178, %p179
      %p182 = scmp.ne.s32.totalorder %s165, %s181
      %p183 = scmp.eq.s32.totalorder %s37, 0
      %p184 = por %p182, %p183
      %s185 = ssub.s32 %s31, %s38
      %p186 = scmp.eq.s32.totalorder %s185, 0
      %s188 = sadd.s32 %s187, 1
      %s189 = scalar_select %p186, %s187, %s188
      %p192 = pneg %p186
      %p193 = scmp.eq.s32.totalorder %s31, 1
      %p194 = por %p192, %p193
      %p195 = scmp.ne.s32.totalorder %s187, %s190
      %p196 = scmp.eq.s32.totalorder %s31, 0
      %p197 = por %p195, %p196
      %p198 = scmp.ne.s32.totalorder %s187, %s190
      %p199 = scmp.eq.s32.totalorder %s36, 1
      %p200 = por %p198, %p199
      %p201 = scmp.ne.s32.totalorder %s190, %s191
      %p202 = scmp.eq.s32.totalorder %s36, 0
      %p203 = por %p201, %p202
      %p204 = scmp.ne.s32.totalorder %s190, %s191
      %p205 = scmp.eq.s32.totalorder %s37, 1
      %p206 = por %p204, %p205
      %p208 = scmp.ne.s32.totalorder %s191, %s207
      %p209 = scmp.eq.s32.totalorder %s37, 0
      %p210 = por %p208, %p209
      %s211 = ssub.s32 %s31, %s38
      %p212 = scmp.eq.s32.totalorder %s211, 0
      %s214 = sadd.s32 %s213, 1
      %s215 = scalar_select %p212, %s213, %s214
      %p218 = pneg %p212
      %p219 = scmp.eq.s32.totalorder %s31, 1
      %p220 = por %p218, %p219
      %p221 = scmp.ne.s32.totalorder %s213, %s216
      %p222 = scmp.eq.s32.totalorder %s31, 0
      %p223 = por %p221, %p222
      %p224 = scmp.ne.s32.totalorder %s213, %s216
      %p225 = scmp.eq.s32.totalorder %s36, 1
      %p226 = por %p224, %p225
      %p227 = scmp.ne.s32.totalorder %s216, %s217
      %p228 = scmp.eq.s32.totalorder %s36, 0
      %p229 = por %p227, %p228
      %p230 = scmp.ne.s32.totalorder %s216, %s217
      %p231 = scmp.eq.s32.totalorder %s37, 1
      %p232 = por %p230, %p231
      %p234 = scmp.ne.s32.totalorder %s217, %s233
      %p235 = scmp.eq.s32.totalorder %s37, 0
      %p236 = por %p234, %p235
      %s237 = ssub.s32 %s31, %s38
      %p238 = scmp.eq.s32.totalorder %s237, 0
      %s240 = sadd.s32 %s239, 1
      %s241 = scalar_select %p238, %s239, %s240
      %p244 = pneg %p238
      %p245 = scmp.eq.s32.totalorder %s31, 1
      %p246 = por %p244, %p245
      %p247 = scmp.ne.s32.totalorder %s239, %s242
      %p248 = scmp.eq.s32.totalorder %s31, 0
      %p249 = por %p247, %p248
      %p250 = scmp.ne.s32.totalorder %s239, %s242
      %p251 = scmp.eq.s32.totalorder %s36, 1
      %p252 = por %p250, %p251
      %p253 = scmp.ne.s32.totalorder %s242, %s243
      %p254 = scmp.eq.s32.totalorder %s36, 0
      %p255 = por %p253, %p254
      %p256 = scmp.ne.s32.totalorder %s242, %s243
      %p257 = scmp.eq.s32.totalorder %s37, 1
      %p258 = por %p256, %p257
      %p260 = scmp.ne.s32.totalorder %s243, %s259
      %p261 = scmp.eq.s32.totalorder %s37, 0
      %p262 = por %p260, %p261
      %s263 = ssub.s32 %s31, %s38
      %p264 = scmp.eq.s32.totalorder %s263, 0
      %s266 = sadd.s32 %s265, 1
      %s267 = scalar_select %p264, %s265, %s266
      %p270 = pneg %p264
      %p271 = scmp.eq.s32.totalorder %s31, 1
      %p272 = por %p270, %p271
      %p273 = scmp.ne.s32.totalorder %s265, %s268
      %p274 = scmp.eq.s32.totalorder %s31, 0
      %p275 = por %p273, %p274
      %p276 = scmp.ne.s32.totalorder %s265, %s268
      %p277 = scmp.eq.s32.totalorder %s36, 1
      %p278 = por %p276, %p277
      %p279 = scmp.ne.s32.totalorder %s268, %s269
      %p280 = scmp.eq.s32.totalorder %s36, 0
      %p281 = por %p279, %p280
      %p282 = scmp.ne.s32.totalorder %s268, %s269
      %p283 = scmp.eq.s32.totalorder %s37, 1
      %p284 = por %p282, %p283
      %p286 = scmp.ne.s32.totalorder %s269, %s285
      %p287 = scmp.eq.s32.totalorder %s37, 0
      %p288 = por %p286, %p287
      %s289 = ssub.s32 %s31, %s38
      %p290 = scmp.eq.s32.totalorder %s289, 0
      %s292 = sadd.s32 %s291, 1
      %s293 = scalar_select %p290, %s291, %s292
      %p296 = pneg %p290
      %p297 = scmp.eq.s32.totalorder %s31, 1
      %p298 = por %p296, %p297
      %p299 = scmp.ne.s32.totalorder %s291, %s294
      %p300 = scmp.eq.s32.totalorder %s31, 0
      %p301 = por %p299, %p300
      %p302 = scmp.ne.s32.totalorder %s291, %s294
      %p303 = scmp.eq.s32.totalorder %s36, 1
      %p304 = por %p302, %p303
      %p305 = scmp.ne.s32.totalorder %s294, %s295
      %p306 = scmp.eq.s32.totalorder %s36, 0
      %p307 = por %p305, %p306
      %p308 = scmp.ne.s32.totalorder %s294, %s295
      %p309 = scmp.eq.s32.totalorder %s37, 1
      %p310 = por %p308, %p309
      %p312 = scmp.ne.s32.totalorder %s295, %s311
      %p313 = scmp.eq.s32.totalorder %s37, 0
      %p314 = por %p312, %p313
      %s315 = ssub.s32 %s31, %s38
      %p316 = scmp.eq.s32.totalorder %s315, 0
      %s318 = sadd.s32 %s317, 1
      %s319 = scalar_select %p316, %s317, %s318
      %p322 = pneg %p316
      %p323 = scmp.eq.s32.totalorder %s31, 1
      %p324 = por %p322, %p323
      %p325 = scmp.ne.s32.totalorder %s317, %s320
      %p326 = scmp.eq.s32.totalorder %s31, 0
      %p327 = por %p325, %p326
      %p328 = scmp.ne.s32.totalorder %s317, %s320
      %p329 = scmp.eq.s32.totalorder %s36, 1
      %p330 = por %p328, %p329
      %p331 = scmp.ne.s32.totalorder %s320, %s321
      %p332 = scmp.eq.s32.totalorder %s36, 0
      %p333 = por %p331, %p332
      %p334 = scmp.ne.s32.totalorder %s320, %s321
      %p335 = scmp.eq.s32.totalorder %s37, 1
      %p336 = por %p334, %p335
      %p338 = scmp.ne.s32.totalorder %s321, %s337
      %p339 = scmp.eq.s32.totalorder %s37, 0
      %p340 = por %p338, %p339
      %s341 = ssub.s32 %s31, %s38
      %p342 = scmp.eq.s32.totalorder %s341, 0
      %s344 = sadd.s32 %s343, 1
      %s345 = scalar_select %p342, %s343, %s344
      %p348 = pneg %p342
      %p349 = scmp.eq.s32.totalorder %s31, 1
      %p350 = por %p348, %p349
      %p351 = scmp.ne.s32.totalorder %s343, %s346
      %p352 = scmp.eq.s32.totalorder %s31, 0
      %p353 = por %p351, %p352
      %p354 = scmp.ne.s32.totalorder %s343, %s346
      %p355 = scmp.eq.s32.totalorder %s36, 1
      %p356 = por %p354, %p355
      %p357 = scmp.ne.s32.totalorder %s346, %s347
      %p358 = scmp.eq.s32.totalorder %s36, 0
      %p359 = por %p357, %p358
      %p360 = scmp.ne.s32.totalorder %s346, %s347
      %p361 = scmp.eq.s32.totalorder %s37, 1
      %p362 = por %p360, %p361
      %p364 = scmp.ne.s32.totalorder %s347, %s363
      %p365 = scmp.eq.s32.totalorder %s37, 0
      %p366 = por %p364, %p365
      %s367 = ssub.s32 %s31, %s38
      %p368 = scmp.eq.s32.totalorder %s367, 0
      %s370 = sadd.s32 %s369, 1
      %s371 = scalar_select %p368, %s369, %s370
      %p374 = pneg %p368
      %p375 = scmp.eq.s32.totalorder %s31, 1
      %p376 = por %p374, %p375
      %p377 = scmp.ne.s32.totalorder %s369, %s372
      %p378 = scmp.eq.s32.totalorder %s31, 0
      %p379 = por %p377, %p378
      %p380 = scmp.ne.s32.totalorder %s369, %s372
      %p381 = scmp.eq.s32.totalorder %s36, 1
      %p382 = por %p380, %p381
      %p383 = scmp.ne.s32.totalorder %s372, %s373
      %p384 = scmp.eq.s32.totalorder %s36, 0
      %p385 = por %p383, %p384
      %p386 = scmp.ne.s32.totalorder %s372, %s373
      %p387 = scmp.eq.s32.totalorder %s37, 1
      %p388 = por %p386, %p387
      %p390 = scmp.ne.s32.totalorder %s373, %s389
      %p391 = scmp.eq.s32.totalorder %s37, 0
      %p392 = por %p390, %p391
      %s393 = ssub.s32 %s31, %s38
      %p394 = scmp.eq.s32.totalorder %s393, 0
      %s396 = sadd.s32 %s395, 1
      %s397 = scalar_select %p394, %s395, %s396
      %p400 = pneg %p394
      %p401 = scmp.eq.s32.totalorder %s31, 1
      %p402 = por %p400, %p401
      %p403 = scmp.ne.s32.totalorder %s395, %s398
      %p404 = scmp.eq.s32.totalorder %s31, 0
      %p405 = por %p403, %p404
      %p406 = scmp.ne.s32.totalorder %s395, %s398
      %p407 = scmp.eq.s32.totalorder %s36, 1
      %p408 = por %p406, %p407
      %p409 = scmp.ne.s32.totalorder %s398, %s399
      %p410 = scmp.eq.s32.totalorder %s36, 0
      %p411 = por %p409, %p410
      %p412 = scmp.ne.s32.totalorder %s398, %s399
      %p413 = scmp.eq.s32.totalorder %s37, 1
      %p414 = por %p412, %p413
      %p416 = scmp.ne.s32.totalorder %s399, %s415
      %p417 = scmp.eq.s32.totalorder %s37, 0
      %p418 = por %p416, %p417
      %s419 = ssub.s32 %s31, %s38
      %p420 = scmp.eq.s32.totalorder %s419, 0
      %s422 = sadd.s32 %s421, 1
      %s423 = scalar_select %p420, %s421, %s422
      %p426 = pneg %p420
      %p427 = scmp.eq.s32.totalorder %s31, 1
      %p428 = por %p426, %p427
      %p429 = scmp.ne.s32.totalorder %s421, %s424
      %p430 = scmp.eq.s32.totalorder %s31, 0
      %p431 = por %p429, %p430
      %p432 = scmp.ne.s32.totalorder %s421, %s424
      %p433 = scmp.eq.s32.totalorder %s36, 1
      %p434 = por %p432, %p433
      %p435 = scmp.ne.s32.totalorder %s424, %s425
      %p436 = scmp.eq.s32.totalorder %s36, 0
      %p437 = por %p435, %p436
      %p438 = scmp.ne.s32.totalorder %s424, %s425
      %p439 = scmp.eq.s32.totalorder %s37, 1
      %p440 = por %p438, %p439
      %p442 = scmp.ne.s32.totalorder %s425, %s441
      %p443 = scmp.eq.s32.totalorder %s37, 0
      %p444 = por %p442, %p443
      %s445 = ssub.s32 %s31, %s38
      %p446 = scmp.eq.s32.totalorder %s445, 0
      %s448 = sadd.s32 %s447, 1
      %s449 = scalar_select %p446, %s447, %s448
      %p452 = pneg %p446
      %p453 = scmp.eq.s32.totalorder %s31, 1
      %p454 = por %p452, %p453
      %p455 = scmp.ne.s32.totalorder %s447, %s450
      %p456 = scmp.eq.s32.totalorder %s31, 0
      %p457 = por %p455, %p456
      %p458 = scmp.ne.s32.totalorder %s447, %s450
      %p459 = scmp.eq.s32.totalorder %s36, 1
      %p460 = por %p458, %p459
      %p461 = scmp.ne.s32.totalorder %s450, %s451
      %p462 = scmp.eq.s32.totalorder %s36, 0
      %p463 = por %p461, %p462
      %p464 = scmp.ne.s32.totalorder %s450, %s451
      %p465 = scmp.eq.s32.totalorder %s37, 1
      %p466 = por %p464, %p465
      %p468 = scmp.ne.s32.totalorder %s451, %s467
      %p469 = scmp.eq.s32.totalorder %s37, 0
      %p470 = por %p468, %p469
      %s471 = ssub.s32 %s31, %s38
      %p472 = scmp.eq.s32.totalorder %s471, 0
      %s474 = sadd.s32 %s473, 1
      %s475 = scalar_select %p472, %s473, %s474
      %p478 = pneg %p472
      %p479 = scmp.eq.s32.totalorder %s31, 1
      %p480 = por %p478, %p479
      %p481 = scmp.ne.s32.totalorder %s473, %s476
      %p482 = scmp.eq.s32.totalorder %s31, 0
      %p483 = por %p481, %p482
      %p484 = scmp.ne.s32.totalorder %s473, %s476
      %p485 = scmp.eq.s32.totalorder %s36, 1
      %p486 = por %p484, %p485
      %p487 = scmp.ne.s32.totalorder %s476, %s477
      %p488 = scmp.eq.s32.totalorder %s36, 0
      %p489 = por %p487, %p488
      %p490 = scmp.ne.s32.totalorder %s476, %s477
      %p491 = scmp.eq.s32.totalorder %s37, 1
      %p492 = por %p490, %p491
      %p494 = scmp.ne.s32.totalorder %s477, %s493
      %p495 = scmp.eq.s32.totalorder %s37, 0
      %p496 = por %p494, %p495
      %s498 = sadd.s32 %s497, 1
      %p501 = scmp.eq.s32.totalorder %s31, 1
      %p502 = scmp.ne.s32.totalorder %s497, %s499
      %p503 = scmp.eq.s32.totalorder %s31, 0
      %p504 = por %p502, %p503
      %p505 = scmp.ne.s32.totalorder %s497, %s499
      %p506 = scmp.eq.s32.totalorder %s36, 1
      %p507 = por %p505, %p506
      %p508 = scmp.ne.s32.totalorder %s499, %s500
      %p509 = scmp.eq.s32.totalorder %s36, 0
      %p510 = por %p508, %p509
      %p511 = scmp.ne.s32.totalorder %s499, %s500
      %p512 = scmp.eq.s32.totalorder %s37, 1
      %p513 = por %p511, %p512
      %p515 = scmp.ne.s32.totalorder %s500, %s514
      %p516 = scmp.eq.s32.totalorder %s37, 0
      %p517 = por %p515, %p516
      %s519 = sadd.s32 %s518, 1
      %p522 = scmp.eq.s32.totalorder %s31, 1
      %p523 = scmp.ne.s32.totalorder %s518, %s520
      %p524 = scmp.eq.s32.totalorder %s31, 0
      %p525 = por %p523, %p524
      %p526 = scmp.ne.s32.totalorder %s518, %s520
      %p527 = scmp.eq.s32.totalorder %s36, 1
      %p528 = por %p526, %p527
      %p529 = scmp.ne.s32.totalorder %s520, %s521
      %p530 = scmp.eq.s32.totalorder %s36, 0
      %p531 = por %p529, %p530
      %p532 = scmp.ne.s32.totalorder %s520, %s521
      %p533 = scmp.eq.s32.totalorder %s37, 1
      %p534 = por %p532, %p533
      %p536 = scmp.ne.s32.totalorder %s521, %s535
      %p537 = scmp.eq.s32.totalorder %s37, 0
      %p538 = por %p536, %p537
      %s540 = sadd.s32 %s539, 1
      %p543 = scmp.eq.s32.totalorder %s31, 1
      %p544 = scmp.ne.s32.totalorder %s539, %s541
      %p545 = scmp.eq.s32.totalorder %s31, 0
      %p546 = por %p544, %p545
      %p547 = scmp.ne.s32.totalorder %s539, %s541
      %p548 = scmp.eq.s32.totalorder %s36, 1
      %p549 = por %p547, %p548
      %p550 = scmp.ne.s32.totalorder %s541, %s542
      %p551 = scmp.eq.s32.totalorder %s36, 0
      %p552 = por %p550, %p551
      %p553 = scmp.ne.s32.totalorder %s541, %s542
      %p554 = scmp.eq.s32.totalorder %s37, 1
      %p555 = por %p553, %p554
      %p557 = scmp.ne.s32.totalorder %s542, %s556
      %p558 = scmp.eq.s32.totalorder %s37, 0
      %p559 = por %p557, %p558
      %s561 = sadd.s32 %s560, 1
      %p564 = scmp.eq.s32.totalorder %s31, 1
      %p565 = scmp.ne.s32.totalorder %s560, %s562
      %p566 = scmp.eq.s32.totalorder %s31, 0
      %p567 = por %p565, %p566
      %p568 = scmp.ne.s32.totalorder %s560, %s562
      %p569 = scmp.eq.s32.totalorder %s36, 1
      %p570 = por %p568, %p569
      %p571 = scmp.ne.s32.totalorder %s562, %s563
      %p572 = scmp.eq.s32.totalorder %s36, 0
      %p573 = por %p571, %p572
      %p574 = scmp.ne.s32.totalorder %s562, %s563
      %p575 = scmp.eq.s32.totalorder %s37, 1
      %p576 = por %p574, %p575
      %p578 = scmp.ne.s32.totalorder %s563, %s577
      %p579 = scmp.eq.s32.totalorder %s37, 0
      %p580 = por %p578, %p579
      %s582 = sadd.s32 %s581, 1
      %p585 = scmp.eq.s32.totalorder %s31, 1
      %p586 = scmp.ne.s32.totalorder %s581, %s583
      %p587 = scmp.eq.s32.totalorder %s31, 0
      %p588 = por %p586, %p587
      %p589 = scmp.ne.s32.totalorder %s581, %s583
      %p590 = scmp.eq.s32.totalorder %s36, 1
      %p591 = por %p589, %p590
      %p592 = scmp.ne.s32.totalorder %s583, %s584
      %p593 = scmp.eq.s32.totalorder %s36, 0
      %p594 = por %p592, %p593
      %p595 = scmp.ne.s32.totalorder %s583, %s584
      %p596 = scmp.eq.s32.totalorder %s37, 1
      %p597 = por %p595, %p596
      %p599 = scmp.ne.s32.totalorder %s584, %s598
      %p600 = scmp.eq.s32.totalorder %s37, 0
      %p601 = por %p599, %p600
      %p602 = scmp.le.s32.totalorder 1, %s31
      %p603 = scmp.lt.s32.totalorder %s31, 3
      %p604 = pnand %p602, %p603
      %p605 = pneg %p604
      // Predicated region
      $region9: #{tpu_custom_call.1} parent=5 // pred_check
        _
      $region10: #{tpu_custom_call.1} parent=5 // pred_check_branch
        %607 = sbr.rel (%p604) target = $region12
      $region11: #{tpu_custom_call.1} parent=5 // pred_region
        %s608 = ssub.s32 %s31, 1
        // Predicated region
        $region13: #{tpu_custom_call.1} parent=11 // pred_check
          %p609 = pneg %p52
        $region14: #{tpu_custom_call.1} parent=11 // pred_check_branch
          %611 = sbr.rel (%p609) target = $region16
        $region15: #{tpu_custom_call.1} parent=11 // pred_region
          %s613 = ssub.s32 256, 256
          %614 = vsyncadd [#allocation4], %s613
          %s615 = sshll.u32 [#allocation3], 4
          %s616 = int_to_ptr.vmem [resolvable:$true] %s615
          %621 = dma.hbm_to_vmem [thread:$0]  %s0, 256, %s616, [#allocation4], 128, 128, 8
        $region16: #{tpu_custom_call.1} parent=11 // pred_fallthru
          _
        // Predicated region
        $region17: #{tpu_custom_call.1} parent=11 // pred_check
          %p622 = pneg %p73
        $region18: #{tpu_custom_call.1} parent=11 // pred_check_branch
          %624 = sbr.rel (%p622) target = $region20
        $region19: #{tpu_custom_call.1} parent=11 // pred_region
          %s626 = ssub.s32 256, 256
          %627 = vsyncadd [#allocation7], %s626
          %s628 = sshll.u32 [#allocation6], 4
          %s629 = int_to_ptr.vmem [resolvable:$true] %s628
          %634 = dma.hbm_to_vmem [thread:$0]  %s1, 256, %s629, [#allocation7], 128, 128, 8
        $region20: #{tpu_custom_call.1} parent=11 // pred_fallthru
          _
        // Predicated region
        $region21: #{tpu_custom_call.1} parent=11 // pred_check
          %p635 = pneg %p510
        $region22: #{tpu_custom_call.1} parent=11 // pred_check_branch
          %637 = sbr.rel (%p635) target = $region24
        $region23: #{tpu_custom_call.1} parent=11 // pred_region
          _
        $region24: #{tpu_custom_call.1} parent=11 // pred_fallthru
          _
        // Predicated region
        $region25: #{tpu_custom_call.1} parent=11 // pred_check
          %p638 = pneg %p531
        $region26: #{tpu_custom_call.1} parent=11 // pred_check_branch
          %640 = sbr.rel (%p638) target = $region28
        $region27: #{tpu_custom_call.1} parent=11 // pred_region
          _
        $region28: #{tpu_custom_call.1} parent=11 // pred_fallthru
          _
        // Predicated region
        $region29: #{tpu_custom_call.1} parent=11 // pred_check
          %p641 = pneg %p552
        $region30: #{tpu_custom_call.1} parent=11 // pred_check_branch
          %643 = sbr.rel (%p641) target = $region32
        $region31: #{tpu_custom_call.1} parent=11 // pred_region
          _
        $region32: #{tpu_custom_call.1} parent=11 // pred_fallthru
          _
        // Predicated region
        $region33: #{tpu_custom_call.1} parent=11 // pred_check
          %p644 = pneg %p573
        $region34: #{tpu_custom_call.1} parent=11 // pred_check_branch
          %646 = sbr.rel (%p644) target = $region36
        $region35: #{tpu_custom_call.1} parent=11 // pred_region
          _
        $region36: #{tpu_custom_call.1} parent=11 // pred_fallthru
          _
      $region12: #{tpu_custom_call.1} parent=5 // pred_fallthru
        _
      %p647 = scmp.lt.s32.totalorder %s31, 2
      // Predicated region
      $region37: #{tpu_custom_call.1} parent=5 // pred_check
        %p648 = pneg %p647
      $region38: #{tpu_custom_call.1} parent=5 // pred_check_branch
        %650 = sbr.rel (%p648) target = $region40
      $region39: #{tpu_custom_call.1} parent=5 // pred_region
        // Predicated region
        $region41: #{tpu_custom_call.1} parent=39 // pred_check
          %p651 = pneg %p93
        $region42: #{tpu_custom_call.1} parent=39 // pred_check_branch
          %653 = sbr.rel (%p651) target = $region44
        $region43: #{tpu_custom_call.1} parent=39 // pred_region
          %p654 = scmp.lt.s32.totalorder %s31, 1
          %s655 = scalar_select %p654, %s31, 1
          %s656 = smul.addr %s655, 4
          %s657 = smul.addr %s656, 4
          %s658 = scalar_lea.vmem %s2, %s657
        $region44: #{tpu_custom_call.1} parent=39 // pred_fallthru
          _
        // Predicated region
        $region45: #{tpu_custom_call.1} parent=39 // pred_check
          %p659 = pneg %p119
        $region46: #{tpu_custom_call.1} parent=39 // pred_check_branch
          %661 = sbr.rel (%p659) target = $region48
        $region47: #{tpu_custom_call.1} parent=39 // pred_region
          %s662 = sand.u32 %s31, 1
          %s663 = scalar_lea.sflag [#allocation4], %s662
          %s664 = sand.u32 %s109, 1
          %s665 = scalar_lea.vmem [#allocation8], %s664
          %s667 = ssub.s32 16, 16
          %668 = vsyncadd %s663, %s667
          %s669 = smul.addr %s31, 16
          %s670 = scalar_lea.hbm %s3, %s669
          %s672 = sshll.u32 %s665, 4
          %s673 = int_to_ptr.vmem [resolvable:$true] %s672
          %675 = dma.hbm_to_vmem [thread:$0]  %s670, 16, %s673, %s663
        $region48: #{tpu_custom_call.1} parent=39 // pred_fallthru
          _
        // Predicated region
        $region49: #{tpu_custom_call.1} parent=39 // pred_check
          %p676 = pneg %p145
        $region50: #{tpu_custom_call.1} parent=39 // pred_check_branch
          %678 = sbr.rel (%p676) target = $region52
        $region51: #{tpu_custom_call.1} parent=39 // pred_region
          %p679 = scmp.lt.s32.totalorder %s31, 1
          %s680 = scalar_select %p679, %s31, 1
          %s681 = smul.addr %s680, 4
          %s682 = smul.addr %s681, 4
          %s683 = scalar_lea.vmem %s4, %s682
        $region52: #{tpu_custom_call.1} parent=39 // pred_fallthru
          _
        // Predicated region
        $region53: #{tpu_custom_call.1} parent=39 // pred_check
          %p684 = pneg %p171
        $region54: #{tpu_custom_call.1} parent=39 // pred_check_branch
          %686 = sbr.rel (%p684) target = $region56
        $region55: #{tpu_custom_call.1} parent=39 // pred_region
          %s687 = sand.u32 %s31, 1
          %s688 = scalar_lea.sflag [#allocation4], %s687
          %s689 = sand.u32 %s161, 1
          %s690 = scalar_lea.vmem [#allocation9], %s689
          %s692 = ssub.s32 16, 16
          %693 = vsyncadd %s688, %s692
          %s694 = smul.addr %s31, 16
          %s695 = scalar_lea.hbm %s5, %s694
          %s697 = sshll.u32 %s690, 4
          %s698 = int_to_ptr.vmem [resolvable:$true] %s697
          %700 = dma.hbm_to_vmem [thread:$0]  %s695, 16, %s698, %s688
        $region56: #{tpu_custom_call.1} parent=39 // pred_fallthru
          _
        // Predicated region
        $region57: #{tpu_custom_call.1} parent=39 // pred_check
          %p701 = pneg %p197
        $region58: #{tpu_custom_call.1} parent=39 // pred_check_branch
          %703 = sbr.rel (%p701) target = $region60
        $region59: #{tpu_custom_call.1} parent=39 // pred_region
          %p704 = scmp.lt.s32.totalorder %s31, 1
          %s705 = scalar_select %p704, %s31, 1
          %s706 = smul.addr %s705, 4
          %s707 = smul.addr %s706, 4
          %s708 = scalar_lea.vmem %s6, %s707
        $region60: #{tpu_custom_call.1} parent=39 // pred_fallthru
          _
        // Predicated region
        $region61: #{tpu_custom_call.1} parent=39 // pred_check
          %p709 = pneg %p223
        $region62: #{tpu_custom_call.1} parent=39 // pred_check_branch
          %711 = sbr.rel (%p709) target = $region64
        $region63: #{tpu_custom_call.1} parent=39 // pred_region
          %s712 = sand.u32 %s31, 1
          %s713 = scalar_lea.sflag [#allocation4], %s712
          %s714 = sand.u32 %s213, 1
          %s715 = scalar_lea.vmem [#allocation10], %s714
          %s717 = ssub.s32 16, 16
          %718 = vsyncadd %s713, %s717
          %s719 = smul.addr %s31, 16
          %s720 = scalar_lea.hbm %s7, %s719
          %s722 = sshll.u32 %s715, 4
          %s723 = int_to_ptr.vmem [resolvable:$true] %s722
          %725 = dma.hbm_to_vmem [thread:$0]  %s720, 16, %s723, %s713
        $region64: #{tpu_custom_call.1} parent=39 // pred_fallthru
          _
        // Predicated region
        $region65: #{tpu_custom_call.1} parent=39 // pred_check
          %p726 = pneg %p249
        $region66: #{tpu_custom_call.1} parent=39 // pred_check_branch
          %728 = sbr.rel (%p726) target = $region68
        $region67: #{tpu_custom_call.1} parent=39 // pred_region
          %s729 = sand.u32 %s31, 1
          %s730 = scalar_lea.sflag [#allocation4], %s729
          %s731 = sand.u32 %s239, 1
          %s732 = smul.addr %s731, 16
          %s733 = scalar_lea.vmem [#allocation11], %s732
          %s735 = ssub.s32 256, 256
          %736 = vsyncadd %s730, %s735
          %s737 = smul.addr %s31, 4
          %s738 = smul.addr %s737, 64
          %s739 = scalar_lea.hbm %s8, %s738
          %s740 = sshll.u32 %s733, 4
          %s741 = int_to_ptr.vmem [resolvable:$true] %s740
          %746 = dma.hbm_to_vmem [thread:$0]  %s739, 256, %s741, %s730, 64, 64, 4
        $region68: #{tpu_custom_call.1} parent=39 // pred_fallthru
          _
        // Predicated region
        $region69: #{tpu_custom_call.1} parent=39 // pred_check
          %p747 = pneg %p275
        $region70: #{tpu_custom_call.1} parent=39 // pred_check_branch
          %749 = sbr.rel (%p747) target = $region72
        $region71: #{tpu_custom_call.1} parent=39 // pred_region
          %s750 = sand.u32 %s31, 1
          %s751 = scalar_lea.sflag [#allocation4], %s750
          %s752 = sand.u32 %s265, 1
          %s753 = scalar_lea.vmem [#allocation12], %s752
          %s755 = ssub.s32 16, 16
          %756 = vsyncadd %s751, %s755
          %s757 = smul.addr %s31, 16
          %s758 = scalar_lea.hbm %s9, %s757
          %s760 = sshll.u32 %s753, 4
          %s761 = int_to_ptr.vmem [resolvable:$true] %s760
          %763 = dma.hbm_to_vmem [thread:$0]  %s758, 16, %s761, %s751
        $region72: #{tpu_custom_call.1} parent=39 // pred_fallthru
          _
        // Predicated region
        $region73: #{tpu_custom_call.1} parent=39 // pred_check
          %p764 = pneg %p301
        $region74: #{tpu_custom_call.1} parent=39 // pred_check_branch
          %766 = sbr.rel (%p764) target = $region76
        $region75: #{tpu_custom_call.1} parent=39 // pred_region
          %p767 = scmp.lt.s32.totalorder %s31, 1
          %s768 = scalar_select %p767, %s31, 1
          %s769 = scalar_lea.vmem %s10, %s768
        $region76: #{tpu_custom_call.1} parent=39 // pred_fallthru
          _
        // Predicated region
        $region77: #{tpu_custom_call.1} parent=39 // pred_check
          %p770 = pneg %p327
        $region78: #{tpu_custom_call.1} parent=39 // pred_check_branch
          %772 = sbr.rel (%p770) target = $region80
        $region79: #{tpu_custom_call.1} parent=39 // pred_region
          %p773 = scmp.lt.s32.totalorder %s31, 1
          %s774 = scalar_select %p773, %s31, 1
          %s775 = scalar_lea.vmem %s11, %s774
        $region80: #{tpu_custom_call.1} parent=39 // pred_fallthru
          _
        // Predicated region
        $region81: #{tpu_custom_call.1} parent=39 // pred_check
          %p776 = pneg %p353
        $region82: #{tpu_custom_call.1} parent=39 // pred_check_branch
          %778 = sbr.rel (%p776) target = $region84
        $region83: #{tpu_custom_call.1} parent=39 // pred_region
          %s779 = sand.u32 %s31, 1
          %s780 = scalar_lea.sflag [#allocation4], %s779
          %s781 = sand.u32 %s343, 1
          %s782 = scalar_lea.vmem [#allocation13], %s781
          %s784 = ssub.s32 16, 16
          %785 = vsyncadd %s780, %s784
          %s786 = smul.addr %s31, 16
          %s787 = scalar_lea.hbm %s12, %s786
          %s789 = sshll.u32 %s782, 4
          %s790 = int_to_ptr.vmem [resolvable:$true] %s789
          %792 = dma.hbm_to_vmem [thread:$0]  %s787, 16, %s790, %s780
        $region84: #{tpu_custom_call.1} parent=39 // pred_fallthru
          _
        // Predicated region
        $region85: #{tpu_custom_call.1} parent=39 // pred_check
          %p793 = pneg %p379
        $region86: #{tpu_custom_call.1} parent=39 // pred_check_branch
          %795 = sbr.rel (%p793) target = $region88
        $region87: #{tpu_custom_call.1} parent=39 // pred_region
          %p796 = scmp.lt.s32.totalorder %s31, 1
          %s797 = scalar_select %p796, %s31, 1
          %s798 = scalar_lea.vmem %s13, %s797
        $region88: #{tpu_custom_call.1} parent=39 // pred_fallthru
          _
        // Predicated region
        $region89: #{tpu_custom_call.1} parent=39 // pred_check
          %p799 = pneg %p405
        $region90: #{tpu_custom_call.1} parent=39 // pred_check_branch
          %801 = sbr.rel (%p799) target = $region92
        $region91: #{tpu_custom_call.1} parent=39 // pred_region
          %s802 = sand.u32 %s31, 1
          %s803 = scalar_lea.sflag [#allocation4], %s802
          %s804 = sand.u32 %s395, 1
          %s805 = smul.addr %s804, 16
          %s806 = scalar_lea.vmem [#allocation14], %s805
          %s808 = ssub.s32 256, 256
          %809 = vsyncadd %s803, %s808
          %s810 = smul.addr %s31, 4
          %s811 = smul.addr %s810, 64
          %s812 = scalar_lea.hbm %s14, %s811
          %s813 = sshll.u32 %s806, 4
          %s814 = int_to_ptr.vmem [resolvable:$true] %s813
          %819 = dma.hbm_to_vmem [thread:$0]  %s812, 256, %s814, %s803, 64, 64, 4
        $region92: #{tpu_custom_call.1} parent=39 // pred_fallthru
          _
        // Predicated region
        $region93: #{tpu_custom_call.1} parent=39 // pred_check
          %p820 = pneg %p431
        $region94: #{tpu_custom_call.1} parent=39 // pred_check_branch
          %822 = sbr.rel (%p820) target = $region96
        $region95: #{tpu_custom_call.1} parent=39 // pred_region
          %p823 = scmp.lt.s32.totalorder %s31, 1
          %s824 = scalar_select %p823, %s31, 1
          %s825 = scalar_lea.vmem %s15, %s824
        $region96: #{tpu_custom_call.1} parent=39 // pred_fallthru
          _
        // Predicated region
        $region97: #{tpu_custom_call.1} parent=39 // pred_check
          %p826 = pneg %p457
        $region98: #{tpu_custom_call.1} parent=39 // pred_check_branch
          %828 = sbr.rel (%p826) target = $region100
        $region99: #{tpu_custom_call.1} parent=39 // pred_region
          %p829 = scmp.lt.s32.totalorder %s31, 1
          %s830 = scalar_select %p829, %s31, 1
          %s831 = smul.addr %s830, 8
          %s832 = smul.addr %s831, 4
          %s833 = scalar_lea.vmem %s16, %s832
        $region100: #{tpu_custom_call.1} parent=39 // pred_fallthru
          _
        // Predicated region
        $region101: #{tpu_custom_call.1} parent=39 // pred_check
          %p834 = pneg %p483
        $region102: #{tpu_custom_call.1} parent=39 // pred_check_branch
          %836 = sbr.rel (%p834) target = $region104
        $region103: #{tpu_custom_call.1} parent=39 // pred_region
          %p837 = scmp.lt.s32.totalorder %s31, 1
          %s838 = scalar_select %p837, %s31, 1
          %s839 = scalar_lea.vmem %s17, %s838
        $region104: #{tpu_custom_call.1} parent=39 // pred_fallthru
          _
      $region40: #{tpu_custom_call.1} parent=5 // pred_fallthru
        _
      %p840 = scmp.le.s32.totalorder 1, %s31
      %p841 = scmp.lt.s32.totalorder %s31, 3
      %p842 = pnand %p840, %p841
      %p843 = pneg %p842
      // Predicated region
      $region105: #{tpu_custom_call.1} parent=5 // pred_check
        _
      $region106: #{tpu_custom_call.1} parent=5 // pred_check_branch
        %845 = sbr.rel (%p842) target = $region108
      $region107: #{tpu_custom_call.1} parent=5 // pred_region
        %s846 = ssub.s32 %s31, 1
        // Predicated region
        $region109: #{tpu_custom_call.1} parent=107 // pred_check
          %p847 = pneg %p52
        $region110: #{tpu_custom_call.1} parent=107 // pred_check_branch
          %849 = sbr.rel (%p847) target = $region112
        $region111: #{tpu_custom_call.1} parent=107 // pred_region
          %850 = dma.done [#allocation4], 256
        $region112: #{tpu_custom_call.1} parent=107 // pred_fallthru
          _
        // Predicated region
        $region113: #{tpu_custom_call.1} parent=107 // pred_check
          %p851 = pneg %p73
        $region114: #{tpu_custom_call.1} parent=107 // pred_check_branch
          %853 = sbr.rel (%p851) target = $region116
        $region115: #{tpu_custom_call.1} parent=107 // pred_region
          %854 = dma.done [#allocation7], 256
        $region116: #{tpu_custom_call.1} parent=107 // pred_fallthru
          _
        %s855 = sand.u32 %s36, 1
        %s856 = scalar_lea.sflag [#allocation4], %s855
        %s857 = sand.u32 %s112, 1
        %s858 = scalar_lea.vmem [#allocation8], %s857
        // Predicated region
        $region117: #{tpu_custom_call.1} parent=107 // pred_check
          %p859 = pneg %p125
        $region118: #{tpu_custom_call.1} parent=107 // pred_check_branch
          %861 = sbr.rel (%p859) target = $region120
        $region119: #{tpu_custom_call.1} parent=107 // pred_region
          %862 = dma.done %s856, 16
        $region120: #{tpu_custom_call.1} parent=107 // pred_fallthru
          _
        %s863 = sand.u32 %s36, 1
        %s864 = scalar_lea.sflag [#allocation4], %s863
        %s865 = sand.u32 %s164, 1
        %s866 = scalar_lea.vmem [#allocation9], %s865
        // Predicated region
        $region121: #{tpu_custom_call.1} parent=107 // pred_check
          %p867 = pneg %p177
        $region122: #{tpu_custom_call.1} parent=107 // pred_check_branch
          %869 = sbr.rel (%p867) target = $region124
        $region123: #{tpu_custom_call.1} parent=107 // pred_region
          %870 = dma.done %s864, 16
        $region124: #{tpu_custom_call.1} parent=107 // pred_fallthru
          _
        %s871 = sand.u32 %s36, 1
        %s872 = scalar_lea.sflag [#allocation4], %s871
        %s873 = sand.u32 %s216, 1
        %s874 = scalar_lea.vmem [#allocation10], %s873
        // Predicated region
        $region125: #{tpu_custom_call.1} parent=107 // pred_check
          %p875 = pneg %p229
        $region126: #{tpu_custom_call.1} parent=107 // pred_check_branch
          %877 = sbr.rel (%p875) target = $region128
        $region127: #{tpu_custom_call.1} parent=107 // pred_region
          %878 = dma.done %s872, 16
        $region128: #{tpu_custom_call.1} parent=107 // pred_fallthru
          _
        %s879 = sand.u32 %s36, 1
        %s880 = scalar_lea.sflag [#allocation4], %s879
        %s881 = sand.u32 %s242, 1
        %s882 = smul.addr %s881, 16
        %s883 = scalar_lea.vmem [#allocation11], %s882
        // Predicated region
        $region129: #{tpu_custom_call.1} parent=107 // pred_check
          %p884 = pneg %p255
        $region130: #{tpu_custom_call.1} parent=107 // pred_check_branch
          %886 = sbr.rel (%p884) target = $region132
        $region131: #{tpu_custom_call.1} parent=107 // pred_region
          %887 = dma.done %s880, 256
        $region132: #{tpu_custom_call.1} parent=107 // pred_fallthru
          _
        %s888 = sand.u32 %s36, 1
        %s889 = scalar_lea.sflag [#allocation4], %s888
        %s890 = sand.u32 %s268, 1
        %s891 = scalar_lea.vmem [#allocation12], %s890
        // Predicated region
        $region133: #{tpu_custom_call.1} parent=107 // pred_check
          %p892 = pneg %p281
        $region134: #{tpu_custom_call.1} parent=107 // pred_check_branch
          %894 = sbr.rel (%p892) target = $region136
        $region135: #{tpu_custom_call.1} parent=107 // pred_region
          %895 = dma.done %s889, 16
        $region136: #{tpu_custom_call.1} parent=107 // pred_fallthru
          _
        %s896 = sand.u32 %s36, 1
        %s897 = scalar_lea.sflag [#allocation4], %s896
        %s898 = sand.u32 %s346, 1
        %s899 = scalar_lea.vmem [#allocation13], %s898
        // Predicated region
        $region137: #{tpu_custom_call.1} parent=107 // pred_check
          %p900 = pneg %p359
        $region138: #{tpu_custom_call.1} parent=107 // pred_check_branch
          %902 = sbr.rel (%p900) target = $region140
        $region139: #{tpu_custom_call.1} parent=107 // pred_region
          %903 = dma.done %s897, 16
        $region140: #{tpu_custom_call.1} parent=107 // pred_fallthru
          _
        %s904 = sand.u32 %s36, 1
        %s905 = scalar_lea.sflag [#allocation4], %s904
        %s906 = sand.u32 %s398, 1
        %s907 = smul.addr %s906, 16
        %s908 = scalar_lea.vmem [#allocation14], %s907
        // Predicated region
        $region141: #{tpu_custom_call.1} parent=107 // pred_check
          %p909 = pneg %p411
        $region142: #{tpu_custom_call.1} parent=107 // pred_check_branch
          %911 = sbr.rel (%p909) target = $region144
        $region143: #{tpu_custom_call.1} parent=107 // pred_region
          %912 = dma.done %s905, 256
        $region144: #{tpu_custom_call.1} parent=107 // pred_fallthru
          _
        %p913 = pneg %p52
        %p914 = pneg %p49
        %p915 = pneg %p73
        %p916 = pneg %p70
        %p917 = scmp.lt.s32.totalorder %s36, 1
        %s918 = scalar_select %p917, %s36, 1
        %s919 = smul.addr %s918, 4
        %s920 = smul.addr %s919, 4
        %s921 = scalar_lea.vmem %s2, %s920
        %p922 = pneg %p99
        %p923 = pneg %p96
        %s924 = sand.u32 %s36, 1
        %s925 = scalar_lea.sflag [#allocation4], %s924
        %s926 = sand.u32 %s112, 1
        %s927 = scalar_lea.vmem [#allocation8], %s926
        %p928 = pneg %p125
        %p929 = pneg %p122
        %p930 = scmp.lt.s32.totalorder %s36, 1
        %s931 = scalar_select %p930, %s36, 1
        %s932 = smul.addr %s931, 4
        %s933 = smul.addr %s932, 4
        %s934 = scalar_lea.vmem %s4, %s933
        %p935 = pneg %p151
        %p936 = pneg %p148
        %s937 = sand.u32 %s36, 1
        %s938 = scalar_lea.sflag [#allocation4], %s937
        %s939 = sand.u32 %s164, 1
        %s940 = scalar_lea.vmem [#allocation9], %s939
        %p941 = pneg %p177
        %p942 = pneg %p174
        %p943 = scmp.lt.s32.totalorder %s36, 1
        %s944 = scalar_select %p943, %s36, 1
        %s945 = smul.addr %s944, 4
        %s946 = smul.addr %s945, 4
        %s947 = scalar_lea.vmem %s6, %s946
        %p948 = pneg %p203
        %p949 = pneg %p200
        %s950 = sand.u32 %s36, 1
        %s951 = scalar_lea.sflag [#allocation4], %s950
        %s952 = sand.u32 %s216, 1
        %s953 = scalar_lea.vmem [#allocation10], %s952
        %p954 = pneg %p229
        %p955 = pneg %p226
        %s956 = sand.u32 %s36, 1
        %s957 = scalar_lea.sflag [#allocation4], %s956
        %s958 = sand.u32 %s242, 1
        %s959 = smul.addr %s958, 16
        %s960 = scalar_lea.vmem [#allocation11], %s959
        %p961 = pneg %p255
        %p962 = pneg %p252
        %s963 = sand.u32 %s36, 1
        %s964 = scalar_lea.sflag [#allocation4], %s963
        %s965 = sand.u32 %s268, 1
        %s966 = scalar_lea.vmem [#allocation12], %s965
        %p967 = pneg %p281
        %p968 = pneg %p278
        %p969 = scmp.lt.s32.totalorder %s36, 1
        %s970 = scalar_select %p969, %s36, 1
        %s971 = scalar_lea.vmem %s10, %s970
        %p972 = pneg %p307
        %p973 = pneg %p304
        %p974 = scmp.lt.s32.totalorder %s36, 1
        %s975 = scalar_select %p974, %s36, 1
        %s976 = scalar_lea.vmem %s11, %s975
        %p977 = pneg %p333
        %p978 = pneg %p330
        %s979 = sand.u32 %s36, 1
        %s980 = scalar_lea.sflag [#allocation4], %s979
        %s981 = sand.u32 %s346, 1
        %s982 = scalar_lea.vmem [#allocation13], %s981
        %p983 = pneg %p359
        %p984 = pneg %p356
        %p985 = scmp.lt.s32.totalorder %s36, 1
        %s986 = scalar_select %p985, %s36, 1
        %s987 = scalar_lea.vmem %s13, %s986
        %p988 = pneg %p385
        %p989 = pneg %p382
        %s990 = sand.u32 %s36, 1
        %s991 = scalar_lea.sflag [#allocation4], %s990
        %s992 = sand.u32 %s398, 1
        %s993 = smul.addr %s992, 16
        %s994 = scalar_lea.vmem [#allocation14], %s993
        %p995 = pneg %p411
        %p996 = pneg %p408
        %p997 = scmp.lt.s32.totalorder %s36, 1
        %s998 = scalar_select %p997, %s36, 1
        %s999 = scalar_lea.vmem %s15, %s998
        %p1000 = pneg %p437
        %p1001 = pneg %p434
        %p1002 = scmp.lt.s32.totalorder %s36, 1
        %s1003 = scalar_select %p1002, %s36, 1
        %s1004 = smul.addr %s1003, 8
        %s1005 = smul.addr %s1004, 4
        %s1006 = scalar_lea.vmem %s16, %s1005
        %p1007 = pneg %p463
        %p1008 = pneg %p460
        %p1009 = scmp.lt.s32.totalorder %s36, 1
        %s1010 = scalar_select %p1009, %s36, 1
        %s1011 = scalar_lea.vmem %s17, %s1010
        %p1012 = pneg %p489
        %p1013 = pneg %p486
        %p1014 = pneg %p510
        %p1015 = pneg %p507
        %p1016 = pneg %p531
        %p1017 = pneg %p528
        %p1018 = pneg %p552
        %p1019 = pneg %p549
        %p1020 = pneg %p573
        %p1021 = pneg %p570
        %p1022 = pneg %p594
        %p1023 = pneg %p591
        %p1024 = scmp.lt.s32.totalorder %s36, 1
        %s1025 = scalar_select %p1024, %s36, 1
        %s1026 = smul.addr %s1025, 4
        %s1027 = smul.addr %s1026, 4
        %s1028 = scalar_lea.vmem %s2, %s1027
        %p1029 = scmp.lt.s32.totalorder %s36, 1
        %s1030 = scalar_select %p1029, %s36, 1
        %s1031 = smul.addr %s1030, 4
        %s1032 = smul.addr %s1031, 4
        %s1033 = scalar_lea.vmem %s4, %s1032
        %p1034 = scmp.lt.s32.totalorder %s36, 1
        %s1035 = scalar_select %p1034, %s36, 1
        %s1036 = smul.addr %s1035, 4
        %s1037 = smul.addr %s1036, 4
        %s1038 = scalar_lea.vmem %s6, %s1037
        %p1039 = scmp.lt.s32.totalorder %s36, 1
        %s1040 = scalar_select %p1039, %s36, 1
        %s1041 = scalar_lea.vmem %s10, %s1040
        %p1042 = scmp.lt.s32.totalorder %s36, 1
        %s1043 = scalar_select %p1042, %s36, 1
        %s1044 = scalar_lea.vmem %s11, %s1043
        %p1045 = scmp.lt.s32.totalorder %s36, 1
        %s1046 = scalar_select %p1045, %s36, 1
        %s1047 = scalar_lea.vmem %s13, %s1046
        %p1048 = scmp.lt.s32.totalorder %s36, 1
        %s1049 = scalar_select %p1048, %s36, 1
        %s1050 = scalar_lea.vmem %s15, %s1049
        %p1051 = scmp.lt.s32.totalorder %s36, 1
        %s1052 = scalar_select %p1051, %s36, 1
        %s1053 = smul.addr %s1052, 8
        %s1054 = smul.addr %s1053, 4
        %s1055 = scalar_lea.vmem %s16, %s1054
        %p1056 = scmp.lt.s32.totalorder %s36, 1
        %s1057 = scalar_select %p1056, %s36, 1
        %s1058 = scalar_lea.vmem %s17, %s1057
        %p1060 = scmp.eq.s32.totalorder %s36, 0
        // Predicated region
        $region145: #{tpu_custom_call.1} parent=107 // pred_check
          %p1061 = pneg %p1060
        $region146: #{tpu_custom_call.1} parent=107 // pred_check_branch
          %1063 = sbr.rel (%p1061) target = $region148
        $region147: #{tpu_custom_call.1} parent=107 // pred_region
          %v1064 = vld [vmem:[#allocation3] sm:$0xff]
          %v1065 = vld [vmem:[#allocation3 + $0x8] sm:$0xff]
          %vm1066 = vcmask 261120
          %1067 = vst.msk [vmem:[#allocation2] sm:$0xff] %vm1066, %v1064
          %1068 = vst.msk [vmem:[#allocation2 + $0x8] sm:$0xff] %vm1066, %v1065
        $region148: #{tpu_custom_call.1} parent=107 // pred_fallthru
          _
        %v1069 = vld [vmem:[#allocation2] sm:$0xff]
        %v1070 = vld [vmem:[#allocation2 + $0x8] sm:$0xff]
        %v1071 = vld [vmem:[#allocation6] sm:$0xff]
        %v1072 = vld [vmem:[#allocation6 + $0x8] sm:$0xff]
        %v1073 = vld [vmem:[%s1041] sm:$0x1]
        %v1074 = vld [vmem:[%s1044] sm:$0x1]
        %vm1075 = vcmask 261120
        %v1076 = vsel %vm1075, %v1069, 0.0
        %1077 = vadd.xlane.f32.xlu0 %v1076
        %v1078 = vpop.xlane.xlu0 %1077
        %v1079 = vsel %vm1075, %v1070, 0.0
        %1080 = vadd.xlane.f32.xlu0 %v1079
        %v1081 = vpop.xlane.xlu0 %1080
        %v1082 = vrcp.pop 32.0
        %v1083 = vmul.f32 %v1078, %v1082
        %v1084 = vmul.f32 %v1081, %v1082
        %v1085 = vsub.f32 %v1069, %v1083
        %v1086 = vsub.f32 %v1070, %v1084
        %v1087 = vmul.f32 %v1085, %v1085
        %v1088 = vmul.f32 %v1086, %v1086
        %v1089 = vsel %vm1075, %v1087, 0.0
        %1090 = vadd.xlane.f32.xlu0 %v1089
        %v1091 = vpop.xlane.xlu0 %1090
        %v1092 = vsel %vm1075, %v1088, 0.0
        %1093 = vadd.xlane.f32.xlu0 %v1092
        %v1094 = vpop.xlane.xlu0 %1093
        %v1095 = vmul.f32 %v1091, %v1082
        %v1096 = vmul.f32 %v1094, %v1082
        %v1097 = vadd.f32 %v1095, 1e-05
        %v1098 = vadd.f32 %v1096, 1e-05
        %v1099 = vrsqrt.pop %v1097
        %v1100 = vrsqrt.pop %v1098
        %v1101 = vmul.f32 %v1085, %v1099
        %v1102 = vmul.f32 %v1086, %v1100
        %v1104 = vlaneseq
        %v1105 = vshrl.u32 %v1104, 7
        %v1106 = vsub.s32 0, %v1105
        %v1107 = vrot.slane %v1073, %v1106
        %v1109 = vmul.f32 %v1101, %v1107
        %v1110 = vmul.f32 %v1102, %v1107
        %v1112 = vlaneseq
        %v1113 = vshrl.u32 %v1112, 7
        %v1114 = vsub.s32 0, %v1113
        %v1115 = vrot.slane %v1074, %v1114
        %v1117 = vadd.f32 %v1109, %v1115
        %v1118 = vadd.f32 %v1110, %v1115
        %v1119 = vpack.c.bf16 %v1118, %v1117
        %v1120 = vld [vmem:[%s1028] sm:$0xf]
        %v1121 = vld [vmem:[%s1028 + $0x4] sm:$0xf]
        %v1122 = vld [vmem:[%s1028 + $0x8] sm:$0xf]
        %v1123 = vld [vmem:[%s1028 + $0xc] sm:$0xf]
        %v1124 = vld [vmem:[%s858] sm:$0x1]
        %v1126 = vlaneseq
        %v1127 = vshrl.u32 %v1126, 7
        %v1128 = vsub.s32 0, %v1127
        %v1129 = vrot.slane %v1124, %v1128
        %v1135 = vunpack.c.l.b16 %v1120
        %v1136 = vunpack.c.l.b16 %v1121
        %v1137 = vunpack.c.l.b16 %v1122
        %v1138 = vunpack.c.l.b16 %v1123
        %v1139 = vpack.c.b16 %v1136, %v1135
        %v1140 = vpack.c.b16 %v1138, %v1137
        %v1144 = vsel %vm1075, %v1119, 0
        %1146 = vmatprep.subr.bf16.mxu0 0
        %1147 = vmatpush1.bf16.msra.mxu0 0
        %1148 = vmatprep.subr.bf16.mxu0 0
        %1149 = vmatpush1.bf16.msra.mxu0 0
        %1150 = vmatprep.subr.bf16.mxu0 0
        %1151 = vmatpush1.bf16.msra.mxu0 0
        %1152 = vmatprep.subr.bf16.mxu0 0
        %1153 = vmatpush1.bf16.msra.mxu0 0
        %1154 = vmatprep.subr.bf16.mxu0 0
        %1155 = vmatpush1.bf16.msra.mxu0 0
        %1156 = vmatprep.subr.bf16.mxu0 0
        %1157 = vmatpush1.bf16.msra.mxu0 0
        %1158 = vmatprep.subr.bf16.mxu0 0
        %1159 = vmatpush1.bf16.msra.mxu0 %v1140
        %1160 = vmatprep.subr.bf16.mxu0 0
        %1161 = vmatpush1.bf16.msra.mxu0 %v1139
        %1162 = vmatprep.subr.bf16.mxu0 0
        %1163 = vmatpush2.bf16.msra.mxu0 0
        %1164 = vmatprep.subr.bf16.mxu0 0
        %1165 = vmatpush2.bf16.msra.mxu0 0
        %1166 = vmatprep.subr.bf16.mxu0 0
        %1167 = vmatpush2.bf16.msra.mxu0 0
        %1168 = vmatprep.subr.bf16.mxu0 0
        %1169 = vmatpush2.bf16.msra.mxu0 0
        %1170 = vmatprep.subr.bf16.mxu0 0
        %1171 = vmatpush2.bf16.msra.mxu0 0
        %1172 = vmatprep.subr.bf16.mxu0 0
        %1173 = vmatpush2.bf16.msra.mxu0 0
        %1174 = vmatprep.subr.bf16.mxu0 0
        %1175 = vmatpush2.bf16.msra.mxu0 0
        %1176 = vmatprep.subr.bf16.mxu0 0
        %1177 = vmatpush2.bf16.msra.mxu0 0
        %1178 = vmatprep.mubr.bf16.mxu0 0
        %1179 = vmatmul.mubr.bf16.gmra.mxu0 %v1144
        %v1180 = vpop.f32.mrf.mxu0
        %v1181 = vadd.f32 %v1129, %v1180
        %v1182 = vpop.f32.mrf.mxu0
        %v1183 = vpop.f32.mrf.mxu0
        %v1184 = vadd.f32 %v1129, %v1183
        %v1185 = vpop.f32.mrf.mxu0
        %1186 = vdwg.mxu0
        %v1187 = vld [vmem:[%s1033] sm:$0xf]
        %v1188 = vld [vmem:[%s1033 + $0x4] sm:$0xf]
        %v1189 = vld [vmem:[%s1033 + $0x8] sm:$0xf]
        %v1190 = vld [vmem:[%s1033 + $0xc] sm:$0xf]
        %v1191 = vld [vmem:[%s866] sm:$0x1]
        %v1193 = vlaneseq
        %v1194 = vshrl.u32 %v1193, 7
        %v1195 = vsub.s32 0, %v1194
        %v1196 = vrot.slane %v1191, %v1195
        %v1202 = vunpack.c.l.b16 %v1187
        %v1203 = vunpack.c.l.b16 %v1188
        %v1204 = vunpack.c.l.b16 %v1189
        %v1205 = vunpack.c.l.b16 %v1190
        %v1206 = vpack.c.b16 %v1203, %v1202
        %v1207 = vpack.c.b16 %v1205, %v1204
        %1210 = vmatprep.subr.bf16.mxu0 0
        %1211 = vmatpush1.bf16.msra.mxu0 0
        %1212 = vmatprep.subr.bf16.mxu0 0
        %1213 = vmatpush1.bf16.msra.mxu0 0
        %1214 = vmatprep.subr.bf16.mxu0 0
        %1215 = vmatpush1.bf16.msra.mxu0 0
        %1216 = vmatprep.subr.bf16.mxu0 0
        %1217 = vmatpush1.bf16.msra.mxu0 0
        %1218 = vmatprep.subr.bf16.mxu0 0
        %1219 = vmatpush1.bf16.msra.mxu0 0
        %1220 = vmatprep.subr.bf16.mxu0 0
        %1221 = vmatpush1.bf16.msra.mxu0 0
        %1222 = vmatprep.subr.bf16.mxu0 0
        %1223 = vmatpush1.bf16.msra.mxu0 %v1207
        %1224 = vmatprep.subr.bf16.mxu0 0
        %1225 = vmatpush1.bf16.msra.mxu0 %v1206
        %1226 = vmatprep.subr.bf16.mxu0 0
        %1227 = vmatpush2.bf16.msra.mxu0 0
        %1228 = vmatprep.subr.bf16.mxu0 0
        %1229 = vmatpush2.bf16.msra.mxu0 0
        %1230 = vmatprep.subr.bf16.mxu0 0
        %1231 = vmatpush2.bf16.msra.mxu0 0
        %1232 = vmatprep.subr.bf16.mxu0 0
        %1233 = vmatpush2.bf16.msra.mxu0 0
        %1234 = vmatprep.subr.bf16.mxu0 0
        %1235 = vmatpush2.bf16.msra.mxu0 0
        %1236 = vmatprep.subr.bf16.mxu0 0
        %1237 = vmatpush2.bf16.msra.mxu0 0
        %1238 = vmatprep.subr.bf16.mxu0 0
        %1239 = vmatpush2.bf16.msra.mxu0 0
        %1240 = vmatprep.subr.bf16.mxu0 0
        %1241 = vmatpush2.bf16.msra.mxu0 0
        %1242 = vmatprep.mubr.bf16.mxu0 0
        %1243 = vmatmul.mubr.bf16.gmra.mxu0 %v1144
        %v1244 = vpop.f32.mrf.mxu0
        %v1245 = vadd.f32 %v1196, %v1244
        %v1246 = vpop.f32.mrf.mxu0
        %v1247 = vpop.f32.mrf.mxu0
        %v1248 = vadd.f32 %v1196, %v1247
        %v1249 = vpop.f32.mrf.mxu0
        %1250 = vdwg.mxu0
        %v1251 = vld [vmem:[%s1038] sm:$0xf]
        %v1252 = vld [vmem:[%s1038 + $0x4] sm:$0xf]
        %v1253 = vld [vmem:[%s1038 + $0x8] sm:$0xf]
        %v1254 = vld [vmem:[%s1038 + $0xc] sm:$0xf]
        %v1255 = vld [vmem:[%s874] sm:$0x1]
        %v1257 = vlaneseq
        %v1258 = vshrl.u32 %v1257, 7
        %v1259 = vsub.s32 0, %v1258
        %v1260 = vrot.slane %v1255, %v1259
        %v1266 = vunpack.c.l.b16 %v1251
        %v1267 = vunpack.c.l.b16 %v1252
        %v1268 = vunpack.c.l.b16 %v1253
        %v1269 = vunpack.c.l.b16 %v1254
        %v1270 = vpack.c.b16 %v1267, %v1266
        %v1271 = vpack.c.b16 %v1269, %v1268
        %1274 = vmatprep.subr.bf16.mxu0 0
        %1275 = vmatpush1.bf16.msra.mxu0 0
        %1276 = vmatprep.subr.bf16.mxu0 0
        %1277 = vmatpush1.bf16.msra.mxu0 0
        %1278 = vmatprep.subr.bf16.mxu0 0
        %1279 = vmatpush1.bf16.msra.mxu0 0
        %1280 = vmatprep.subr.bf16.mxu0 0
        %1281 = vmatpush1.bf16.msra.mxu0 0
        %1282 = vmatprep.subr.bf16.mxu0 0
        %1283 = vmatpush1.bf16.msra.mxu0 0
        %1284 = vmatprep.subr.bf16.mxu0 0
        %1285 = vmatpush1.bf16.msra.mxu0 0
        %1286 = vmatprep.subr.bf16.mxu0 0
        %1287 = vmatpush1.bf16.msra.mxu0 %v1271
        %1288 = vmatprep.subr.bf16.mxu0 0
        %1289 = vmatpush1.bf16.msra.mxu0 %v1270
        %1290 = vmatprep.subr.bf16.mxu0 0
        %1291 = vmatpush2.bf16.msra.mxu0 0
        %1292 = vmatprep.subr.bf16.mxu0 0
        %1293 = vmatpush2.bf16.msra.mxu0 0
        %1294 = vmatprep.subr.bf16.mxu0 0
        %1295 = vmatpush2.bf16.msra.mxu0 0
        %1296 = vmatprep.subr.bf16.mxu0 0
        %1297 = vmatpush2.bf16.msra.mxu0 0
        %1298 = vmatprep.subr.bf16.mxu0 0
        %1299 = vmatpush2.bf16.msra.mxu0 0
        %1300 = vmatprep.subr.bf16.mxu0 0
        %1301 = vmatpush2.bf16.msra.mxu0 0
        %1302 = vmatprep.subr.bf16.mxu0 0
        %1303 = vmatpush2.bf16.msra.mxu0 0
        %1304 = vmatprep.subr.bf16.mxu0 0
        %1305 = vmatpush2.bf16.msra.mxu0 0
        %1306 = vmatprep.mubr.bf16.mxu0 0
        %1307 = vmatmul.mubr.bf16.gmra.mxu0 %v1144
        %v1308 = vpop.f32.mrf.mxu0
        %v1309 = vadd.f32 %v1260, %v1308
        %v1310 = vpop.f32.mrf.mxu0
        %v1311 = vpop.f32.mrf.mxu0
        %v1312 = vadd.f32 %v1260, %v1311
        %v1313 = vpop.f32.mrf.mxu0
        %1314 = vdwg.mxu0
        %v1315 = vmul.f32 %v1181, 0.25
        %v1316 = vmul.f32 %v1184, 0.25
        %v1317 = vpack.c.bf16 %v1315, %v1315
        %v1318 = vpack.c.bf16 %v1316, %v1316
        %v1319 = vpack.c.bf16 %v1245, %v1245
        %v1320 = vpack.c.bf16 %v1248, %v1248
        %v1321 = vpack.c.bf16 %v1309, %v1309
        %v1322 = vpack.c.bf16 %v1312, %v1312
        %v1323 = vld [vmem:[%s883] sm:$0xf]
        %v1324 = vld [vmem:[%s883 + $0x4] sm:$0xf]
        %v1325 = vld [vmem:[%s883 + $0x8] sm:$0xf]
        %v1326 = vld [vmem:[%s883 + $0xc] sm:$0xf]
        %vm1327 = vcmask 130048
        %v1329 = vsel %vm1327, %v1317, 0
        %v1332 = vsel %vm1327, %v1319, 0
        %1334 = vmatprep.subr.bf16.mxu0 0
        %1335 = vmatpush1.bf16.xpose.msra.mxu0 0
        %1336 = vmatprep.subr.bf16.mxu0 0
        %1337 = vmatpush1.bf16.xpose.msra.mxu0 0
        %1338 = vmatprep.subr.bf16.mxu0 0
        %1339 = vmatpush1.bf16.xpose.msra.mxu0 0
        %1340 = vmatprep.subr.bf16.mxu0 0
        %1341 = vmatpush1.bf16.xpose.msra.mxu0 0
        %1342 = vmatprep.subr.bf16.mxu0 0
        %1343 = vmatpush1.bf16.xpose.msra.mxu0 0
        %1344 = vmatprep.subr.bf16.mxu0 0
        %1345 = vmatpush1.bf16.xpose.msra.mxu0 0
        %1346 = vmatprep.subr.bf16.mxu0 0
        %1347 = vmatpush1.bf16.xpose.msra.mxu0 0
        %1348 = vmatprep.subr.bf16.mxu0 0
        %1349 = vmatpush1.bf16.xpose.msra.mxu0 %v1332
        %1350 = vmatprep.subr.bf16.mxu0 0
        %1351 = vmatpush2.bf16.xpose.msra.mxu0 0
        %1352 = vmatprep.subr.bf16.mxu0 0
        %1353 = vmatpush2.bf16.xpose.msra.mxu0 0
        %1354 = vmatprep.subr.bf16.mxu0 0
        %1355 = vmatpush2.bf16.xpose.msra.mxu0 0
        %1356 = vmatprep.subr.bf16.mxu0 0
        %1357 = vmatpush2.bf16.xpose.msra.mxu0 0
        %1358 = vmatprep.subr.bf16.mxu0 0
        %1359 = vmatpush2.bf16.xpose.msra.mxu0 0
        %1360 = vmatprep.subr.bf16.mxu0 0
        %1361 = vmatpush2.bf16.xpose.msra.mxu0 0
        %1362 = vmatprep.subr.bf16.mxu0 0
        %1363 = vmatpush2.bf16.xpose.msra.mxu0 0
        %1364 = vmatprep.subr.bf16.mxu0 0
        %1365 = vmatpush2.bf16.xpose.msra.mxu0 0
        %1366 = vmatprep.mubr.bf16.mxu0 0
        %1367 = vmatmul.mubr.bf16.gmra.mxu0 %v1329
        %v1368 = vpop.f32.mrf.mxu0
        %v1369 = vadd.f32 %v1071, %v1368
        %v1370 = vpop.f32.mrf.mxu0
        %v1371 = vpop.f32.mrf.mxu0
        %v1372 = vpop.f32.mrf.mxu0
        %1373 = vdwg.mxu0
        %v1375 = vsel %vm1327, %v1318, 0
        %v1378 = vsel %vm1327, %v1320, 0
        %1380 = vmatprep.subr.bf16.mxu0 0
        %1381 = vmatpush1.bf16.xpose.msra.mxu0 0
        %1382 = vmatprep.subr.bf16.mxu0 0
        %1383 = vmatpush1.bf16.xpose.msra.mxu0 0
        %1384 = vmatprep.subr.bf16.mxu0 0
        %1385 = vmatpush1.bf16.xpose.msra.mxu0 0
        %1386 = vmatprep.subr.bf16.mxu0 0
        %1387 = vmatpush1.bf16.xpose.msra.mxu0 0
        %1388 = vmatprep.subr.bf16.mxu0 0
        %1389 = vmatpush1.bf16.xpose.msra.mxu0 0
        %1390 = vmatprep.subr.bf16.mxu0 0
        %1391 = vmatpush1.bf16.xpose.msra.mxu0 0
        %1392 = vmatprep.subr.bf16.mxu0 0
        %1393 = vmatpush1.bf16.xpose.msra.mxu0 0
        %1394 = vmatprep.subr.bf16.mxu0 0
        %1395 = vmatpush1.bf16.xpose.msra.mxu0 %v1378
        %1396 = vmatprep.subr.bf16.mxu0 0
        %1397 = vmatpush2.bf16.xpose.msra.mxu0 0
        %1398 = vmatprep.subr.bf16.mxu0 0
        %1399 = vmatpush2.bf16.xpose.msra.mxu0 0
        %1400 = vmatprep.subr.bf16.mxu0 0
        %1401 = vmatpush2.bf16.xpose.msra.mxu0 0
        %1402 = vmatprep.subr.bf16.mxu0 0
        %1403 = vmatpush2.bf16.xpose.msra.mxu0 0
        %1404 = vmatprep.subr.bf16.mxu0 0
        %1405 = vmatpush2.bf16.xpose.msra.mxu0 0
        %1406 = vmatprep.subr.bf16.mxu0 0
        %1407 = vmatpush2.bf16.xpose.msra.mxu0 0
        %1408 = vmatprep.subr.bf16.mxu0 0
        %1409 = vmatpush2.bf16.xpose.msra.mxu0 0
        %1410 = vmatprep.subr.bf16.mxu0 0
        %1411 = vmatpush2.bf16.xpose.msra.mxu0 0
        %1412 = vmatprep.mubr.bf16.mxu0 0
        %1413 = vmatmul.mubr.bf16.gmra.mxu0 %v1375
        %v1414 = vpop.f32.mrf.mxu0
        %v1415 = vadd.f32 %v1072, %v1414
        %v1416 = vpop.f32.mrf.mxu0
        %v1417 = vpop.f32.mrf.mxu0
        %v1418 = vpop.f32.mrf.mxu0
        %1419 = vdwg.mxu0
        %vm1420 = vcmask 64512
        %v1421 = vsel %vm1420, %v1369, -inf
        %1422 = vmax.xlane.f32.xlu0 %v1421
        %v1423 = vpop.xlane.xlu0 %1422
        %v1424 = vsel %vm1420, %v1415, -inf
        %1425 = vmax.xlane.f32.xlu0 %v1424
        %v1426 = vpop.xlane.xlu0 %1425
        %v1427 = vsub.f32 %v1369, %v1423
        %v1428 = vsub.f32 %v1415, %v1426
        %v1429 = vmul.f32 %v1427, 1.442695
        %v1430 = vpow.pop %v1429
        %v1431 = vmul.f32 %v1428, 1.442695
        %v1432 = vpow.pop %v1431
        %v1433 = vsel %vm1420, %v1430, 0.0
        %1434 = vadd.xlane.f32.xlu0 %v1433
        %v1435 = vpop.xlane.xlu0 %1434
        %v1436 = vsel %vm1420, %v1432, 0.0
        %1437 = vadd.xlane.f32.xlu0 %v1436
        %v1438 = vpop.xlane.xlu0 %1437
        %v1439 = vrcp.pop %v1435
        %v1440 = vrcp.pop %v1438
        %v1441 = vmul.f32 %v1430, %v1439
        %v1442 = vmul.f32 %v1432, %v1440
        %v1443 = vpack.c.bf16 %v1441, %v1441
        %v1444 = vpack.c.bf16 %v1442, %v1442
        %v1446 = vsel %vm1420, %v1443, 0
        %vm1448 = vcmask 1043456
        %v1450 = vsel %vm1448, %v1321, 0
        %1452 = vmatprep.subr.bf16.mxu0 0
        %1453 = vmatpush1.bf16.msra.mxu0 0
        %1454 = vmatprep.subr.bf16.mxu0 0
        %1455 = vmatpush1.bf16.msra.mxu0 0
        %1456 = vmatprep.subr.bf16.mxu0 0
        %1457 = vmatpush1.bf16.msra.mxu0 0
        %1458 = vmatprep.subr.bf16.mxu0 0
        %1459 = vmatpush1.bf16.msra.mxu0 0
        %1460 = vmatprep.subr.bf16.mxu0 0
        %1461 = vmatpush1.bf16.msra.mxu0 0
        %1462 = vmatprep.subr.bf16.mxu0 0
        %1463 = vmatpush1.bf16.msra.mxu0 0
        %1464 = vmatprep.subr.bf16.mxu0 0
        %1465 = vmatpush1.bf16.msra.mxu0 0
        %1466 = vmatprep.subr.bf16.mxu0 0
        %1467 = vmatpush1.bf16.msra.mxu0 %v1450
        %1468 = vmatprep.subr.bf16.mxu0 0
        %1469 = vmatpush2.bf16.msra.mxu0 0
        %1470 = vmatprep.subr.bf16.mxu0 0
        %1471 = vmatpush2.bf16.msra.mxu0 0
        %1472 = vmatprep.subr.bf16.mxu0 0
        %1473 = vmatpush2.bf16.msra.mxu0 0
        %1474 = vmatprep.subr.bf16.mxu0 0
        %1475 = vmatpush2.bf16.msra.mxu0 0
        %1476 = vmatprep.subr.bf16.mxu0 0
        %1477 = vmatpush2.bf16.msra.mxu0 0
        %1478 = vmatprep.subr.bf16.mxu0 0
        %1479 = vmatpush2.bf16.msra.mxu0 0
        %1480 = vmatprep.subr.bf16.mxu0 0
        %1481 = vmatpush2.bf16.msra.mxu0 0
        %1482 = vmatprep.subr.bf16.mxu0 0
        %1483 = vmatpush2.bf16.msra.mxu0 0
        %1484 = vmatprep.mubr.bf16.mxu0 0
        %1485 = vmatmul.mubr.bf16.gmra.mxu0 %v1446
        %v1486 = vpop.f32.mrf.mxu0
        %v1487 = vadd.f32 0.0, %v1486
        %v1488 = vpop.f32.mrf.mxu0
        %v1489 = vpop.f32.mrf.mxu0
        %v1490 = vpop.f32.mrf.mxu0
        %1491 = vdwg.mxu0
        %v1493 = vsel %vm1420, %v1444, 0
        %v1496 = vsel %vm1448, %v1322, 0
        %1498 = vmatprep.subr.bf16.mxu0 0
        %1499 = vmatpush1.bf16.msra.mxu0 0
        %1500 = vmatprep.subr.bf16.mxu0 0
        %1501 = vmatpush1.bf16.msra.mxu0 0
        %1502 = vmatprep.subr.bf16.mxu0 0
        %1503 = vmatpush1.bf16.msra.mxu0 0
        %1504 = vmatprep.subr.bf16.mxu0 0
        %1505 = vmatpush1.bf16.msra.mxu0 0
        %1506 = vmatprep.subr.bf16.mxu0 0
        %1507 = vmatpush1.bf16.msra.mxu0 0
        %1508 = vmatprep.subr.bf16.mxu0 0
        %1509 = vmatpush1.bf16.msra.mxu0 0
        %1510 = vmatprep.subr.bf16.mxu0 0
        %1511 = vmatpush1.bf16.msra.mxu0 0
        %1512 = vmatprep.subr.bf16.mxu0 0
        %1513 = vmatpush1.bf16.msra.mxu0 %v1496
        %1514 = vmatprep.subr.bf16.mxu0 0
        %1515 = vmatpush2.bf16.msra.mxu0 0
        %1516 = vmatprep.subr.bf16.mxu0 0
        %1517 = vmatpush2.bf16.msra.mxu0 0
        %1518 = vmatprep.subr.bf16.mxu0 0
        %1519 = vmatpush2.bf16.msra.mxu0 0
        %1520 = vmatprep.subr.bf16.mxu0 0
        %1521 = vmatpush2.bf16.msra.mxu0 0
        %1522 = vmatprep.subr.bf16.mxu0 0
        %1523 = vmatpush2.bf16.msra.mxu0 0
        %1524 = vmatprep.subr.bf16.mxu0 0
        %1525 = vmatpush2.bf16.msra.mxu0 0
        %1526 = vmatprep.subr.bf16.mxu0 0
        %1527 = vmatpush2.bf16.msra.mxu0 0
        %1528 = vmatprep.subr.bf16.mxu0 0
        %1529 = vmatpush2.bf16.msra.mxu0 0
        %1530 = vmatprep.mubr.bf16.mxu0 0
        %1531 = vmatmul.mubr.bf16.gmra.mxu0 %v1493
        %v1532 = vpop.f32.mrf.mxu0
        %v1533 = vadd.f32 0.0, %v1532
        %v1534 = vpop.f32.mrf.mxu0
        %v1535 = vpop.f32.mrf.mxu0
        %v1536 = vpop.f32.mrf.mxu0
        %1537 = vdwg.mxu0
        %v1538 = vpack.c.bf16 %v1533, %v1487
        %1540 = vrot.lane.b32.xlu0 %v1317, 112
        %v1541 = vpop.permute.xlu0 %1540
        %1543 = vrot.lane.b32.xlu0 %v1319, 112
        %v1544 = vpop.permute.xlu0 %1543
        %v1546 = vsel %vm1327, %v1541, 0
        %v1549 = vsel %vm1327, %v1544, 0
        %1551 = vmatprep.subr.bf16.mxu0 0
        %1552 = vmatpush1.bf16.xpose.msra.mxu0 0
        %1553 = vmatprep.subr.bf16.mxu0 0
        %1554 = vmatpush1.bf16.xpose.msra.mxu0 0
        %1555 = vmatprep.subr.bf16.mxu0 0
        %1556 = vmatpush1.bf16.xpose.msra.mxu0 0
        %1557 = vmatprep.subr.bf16.mxu0 0
        %1558 = vmatpush1.bf16.xpose.msra.mxu0 0
        %1559 = vmatprep.subr.bf16.mxu0 0
        %1560 = vmatpush1.bf16.xpose.msra.mxu0 0
        %1561 = vmatprep.subr.bf16.mxu0 0
        %1562 = vmatpush1.bf16.xpose.msra.mxu0 0
        %1563 = vmatprep.subr.bf16.mxu0 0
        %1564 = vmatpush1.bf16.xpose.msra.mxu0 0
        %1565 = vmatprep.subr.bf16.mxu0 0
        %1566 = vmatpush1.bf16.xpose.msra.mxu0 %v1549
        %1567 = vmatprep.subr.bf16.mxu0 0
        %1568 = vmatpush2.bf16.xpose.msra.mxu0 0
        %1569 = vmatprep.subr.bf16.mxu0 0
        %1570 = vmatpush2.bf16.xpose.msra.mxu0 0
        %1571 = vmatprep.subr.bf16.mxu0 0
        %1572 = vmatpush2.bf16.xpose.msra.mxu0 0
        %1573 = vmatprep.subr.bf16.mxu0 0
        %1574 = vmatpush2.bf16.xpose.msra.mxu0 0
        %1575 = vmatprep.subr.bf16.mxu0 0
        %1576 = vmatpush2.bf16.xpose.msra.mxu0 0
        %1577 = vmatprep.subr.bf16.mxu0 0
        %1578 = vmatpush2.bf16.xpose.msra.mxu0 0
        %1579 = vmatprep.subr.bf16.mxu0 0
        %1580 = vmatpush2.bf16.xpose.msra.mxu0 0
        %1581 = vmatprep.subr.bf16.mxu0 0
        %1582 = vmatpush2.bf16.xpose.msra.mxu0 0
        %1583 = vmatprep.mubr.bf16.mxu0 0
        %1584 = vmatmul.mubr.bf16.gmra.mxu0 %v1546
        %v1585 = vpop.f32.mrf.mxu0
        %v1586 = vadd.f32 %v1071, %v1585
        %v1587 = vpop.f32.mrf.mxu0
        %v1588 = vpop.f32.mrf.mxu0
        %v1589 = vpop.f32.mrf.mxu0
        %1590 = vdwg.mxu0
        %1592 = vrot.lane.b32.xlu0 %v1318, 112
        %v1593 = vpop.permute.xlu0 %1592
        %1595 = vrot.lane.b32.xlu0 %v1320, 112
        %v1596 = vpop.permute.xlu0 %1595
        %v1598 = vsel %vm1327, %v1593, 0
        %v1601 = vsel %vm1327, %v1596, 0
        %1603 = vmatprep.subr.bf16.mxu0 0
        %1604 = vmatpush1.bf16.xpose.msra.mxu0 0
        %1605 = vmatprep.subr.bf16.mxu0 0
        %1606 = vmatpush1.bf16.xpose.msra.mxu0 0
        %1607 = vmatprep.subr.bf16.mxu0 0
        %1608 = vmatpush1.bf16.xpose.msra.mxu0 0
        %1609 = vmatprep.subr.bf16.mxu0 0
        %1610 = vmatpush1.bf16.xpose.msra.mxu0 0
        %1611 = vmatprep.subr.bf16.mxu0 0
        %1612 = vmatpush1.bf16.xpose.msra.mxu0 0
        %1613 = vmatprep.subr.bf16.mxu0 0
        %1614 = vmatpush1.bf16.xpose.msra.mxu0 0
        %1615 = vmatprep.subr.bf16.mxu0 0
        %1616 = vmatpush1.bf16.xpose.msra.mxu0 0
        %1617 = vmatprep.subr.bf16.mxu0 0
        %1618 = vmatpush1.bf16.xpose.msra.mxu0 %v1601
        %1619 = vmatprep.subr.bf16.mxu0 0
        %1620 = vmatpush2.bf16.xpose.msra.mxu0 0
        %1621 = vmatprep.subr.bf16.mxu0 0
        %1622 = vmatpush2.bf16.xpose.msra.mxu0 0
        %1623 = vmatprep.subr.bf16.mxu0 0
        %1624 = vmatpush2.bf16.xpose.msra.mxu0 0
        %1625 = vmatprep.subr.bf16.mxu0 0
        %1626 = vmatpush2.bf16.xpose.msra.mxu0 0
        %1627 = vmatprep.subr.bf16.mxu0 0
        %1628 = vmatpush2.bf16.xpose.msra.mxu0 0
        %1629 = vmatprep.subr.bf16.mxu0 0
        %1630 = vmatpush2.bf16.xpose.msra.mxu0 0
        %1631 = vmatprep.subr.bf16.mxu0 0
        %1632 = vmatpush2.bf16.xpose.msra.mxu0 0
        %1633 = vmatprep.subr.bf16.mxu0 0
        %1634 = vmatpush2.bf16.xpose.msra.mxu0 0
        %1635 = vmatprep.mubr.bf16.mxu0 0
        %1636 = vmatmul.mubr.bf16.gmra.mxu0 %v1598
        %v1637 = vpop.f32.mrf.mxu0
        %v1638 = vadd.f32 %v1072, %v1637
        %v1639 = vpop.f32.mrf.mxu0
        %v1640 = vpop.f32.mrf.mxu0
        %v1641 = vpop.f32.mrf.mxu0
        %1642 = vdwg.mxu0
        %v1643 = vsel %vm1420, %v1586, -inf
        %1644 = vmax.xlane.f32.xlu0 %v1643
        %v1645 = vpop.xlane.xlu0 %1644
        %v1646 = vsel %vm1420, %v1638, -inf
        %1647 = vmax.xlane.f32.xlu0 %v1646
        %v1648 = vpop.xlane.xlu0 %1647
        %v1649 = vsub.f32 %v1586, %v1645
        %v1650 = vsub.f32 %v1638, %v1648
        %v1651 = vmul.f32 %v1649, 1.442695
        %v1652 = vpow.pop %v1651
        %v1653 = vmul.f32 %v1650, 1.442695
        %v1654 = vpow.pop %v1653
        %v1655 = vsel %vm1420, %v1652, 0.0
        %1656 = vadd.xlane.f32.xlu0 %v1655
        %v1657 = vpop.xlane.xlu0 %1656
        %v1658 = vsel %vm1420, %v1654, 0.0
        %1659 = vadd.xlane.f32.xlu0 %v1658
        %v1660 = vpop.xlane.xlu0 %1659
        %v1661 = vrcp.pop %v1657
        %v1662 = vrcp.pop %v1660
        %v1663 = vmul.f32 %v1652, %v1661
        %v1664 = vmul.f32 %v1654, %v1662
        %v1665 = vpack.c.bf16 %v1663, %v1663
        %v1666 = vpack.c.bf16 %v1664, %v1664
        %1668 = vrot.lane.b32.xlu0 %v1321, 112
        %v1669 = vpop.permute.xlu0 %1668
        %v1671 = vsel %vm1420, %v1665, 0
        %v1674 = vsel %vm1448, %v1669, 0
        %1676 = vmatprep.subr.bf16.mxu0 0
        %1677 = vmatpush1.bf16.msra.mxu0 0
        %1678 = vmatprep.subr.bf16.mxu0 0
        %1679 = vmatpush1.bf16.msra.mxu0 0
        %1680 = vmatprep.subr.bf16.mxu0 0
        %1681 = vmatpush1.bf16.msra.mxu0 0
        %1682 = vmatprep.subr.bf16.mxu0 0
        %1683 = vmatpush1.bf16.msra.mxu0 0
        %1684 = vmatprep.subr.bf16.mxu0 0
        %1685 = vmatpush1.bf16.msra.mxu0 0
        %1686 = vmatprep.subr.bf16.mxu0 0
        %1687 = vmatpush1.bf16.msra.mxu0 0
        %1688 = vmatprep.subr.bf16.mxu0 0
        %1689 = vmatpush1.bf16.msra.mxu0 0
        %1690 = vmatprep.subr.bf16.mxu0 0
        %1691 = vmatpush1.bf16.msra.mxu0 %v1674
        %1692 = vmatprep.subr.bf16.mxu0 0
        %1693 = vmatpush2.bf16.msra.mxu0 0
        %1694 = vmatprep.subr.bf16.mxu0 0
        %1695 = vmatpush2.bf16.msra.mxu0 0
        %1696 = vmatprep.subr.bf16.mxu0 0
        %1697 = vmatpush2.bf16.msra.mxu0 0
        %1698 = vmatprep.subr.bf16.mxu0 0
        %1699 = vmatpush2.bf16.msra.mxu0 0
        %1700 = vmatprep.subr.bf16.mxu0 0
        %1701 = vmatpush2.bf16.msra.mxu0 0
        %1702 = vmatprep.subr.bf16.mxu0 0
        %1703 = vmatpush2.bf16.msra.mxu0 0
        %1704 = vmatprep.subr.bf16.mxu0 0
        %1705 = vmatpush2.bf16.msra.mxu0 0
        %1706 = vmatprep.subr.bf16.mxu0 0
        %1707 = vmatpush2.bf16.msra.mxu0 0
        %1708 = vmatprep.mubr.bf16.mxu0 0
        %1709 = vmatmul.mubr.bf16.gmra.mxu0 %v1671
        %v1710 = vpop.f32.mrf.mxu0
        %v1711 = vadd.f32 0.0, %v1710
        %v1712 = vpop.f32.mrf.mxu0
        %v1713 = vpop.f32.mrf.mxu0
        %v1714 = vpop.f32.mrf.mxu0
        %1715 = vdwg.mxu0
        %1717 = vrot.lane.b32.xlu0 %v1322, 112
        %v1718 = vpop.permute.xlu0 %1717
        %v1720 = vsel %vm1420, %v1666, 0
        %v1723 = vsel %vm1448, %v1718, 0
        %1725 = vmatprep.subr.bf16.mxu0 0
        %1726 = vmatpush1.bf16.msra.mxu0 0
        %1727 = vmatprep.subr.bf16.mxu0 0
        %1728 = vmatpush1.bf16.msra.mxu0 0
        %1729 = vmatprep.subr.bf16.mxu0 0
        %1730 = vmatpush1.bf16.msra.mxu0 0
        %1731 = vmatprep.subr.bf16.mxu0 0
        %1732 = vmatpush1.bf16.msra.mxu0 0
        %1733 = vmatprep.subr.bf16.mxu0 0
        %1734 = vmatpush1.bf16.msra.mxu0 0
        %1735 = vmatprep.subr.bf16.mxu0 0
        %1736 = vmatpush1.bf16.msra.mxu0 0
        %1737 = vmatprep.subr.bf16.mxu0 0
        %1738 = vmatpush1.bf16.msra.mxu0 0
        %1739 = vmatprep.subr.bf16.mxu0 0
        %1740 = vmatpush1.bf16.msra.mxu0 %v1723
        %1741 = vmatprep.subr.bf16.mxu0 0
        %1742 = vmatpush2.bf16.msra.mxu0 0
        %1743 = vmatprep.subr.bf16.mxu0 0
        %1744 = vmatpush2.bf16.msra.mxu0 0
        %1745 = vmatprep.subr.bf16.mxu0 0
        %1746 = vmatpush2.bf16.msra.mxu0 0
        %1747 = vmatprep.subr.bf16.mxu0 0
        %1748 = vmatpush2.bf16.msra.mxu0 0
        %1749 = vmatprep.subr.bf16.mxu0 0
        %1750 = vmatpush2.bf16.msra.mxu0 0
        %1751 = vmatprep.subr.bf16.mxu0 0
        %1752 = vmatpush2.bf16.msra.mxu0 0
        %1753 = vmatprep.subr.bf16.mxu0 0
        %1754 = vmatpush2.bf16.msra.mxu0 0
        %1755 = vmatprep.subr.bf16.mxu0 0
        %1756 = vmatpush2.bf16.msra.mxu0 0
        %1757 = vmatprep.mubr.bf16.mxu0 0
        %1758 = vmatmul.mubr.bf16.gmra.mxu0 %v1720
        %v1759 = vpop.f32.mrf.mxu0
        %v1760 = vadd.f32 0.0, %v1759
        %v1761 = vpop.f32.mrf.mxu0
        %v1762 = vpop.f32.mrf.mxu0
        %v1763 = vpop.f32.mrf.mxu0
        %1764 = vdwg.mxu0
        %v1765 = vpack.c.bf16 %v1760, %v1711
        %v1768 = vunpack.c.l.b16 %v1325
        %v1769 = vunpack.c.l.b16 %v1326
        %v1770 = vpack.c.b16 %v1769, %v1768
        %v1773 = vsel %vm1327, %v1765, 0
        %1775 = vmatprep.subr.bf16.mxu0 0
        %1776 = vmatpush1.bf16.msra.mxu0 0
        %1777 = vmatprep.subr.bf16.mxu0 0
        %1778 = vmatpush1.bf16.msra.mxu0 0
        %1779 = vmatprep.subr.bf16.mxu0 0
        %1780 = vmatpush1.bf16.msra.mxu0 0
        %1781 = vmatprep.subr.bf16.mxu0 0
        %1782 = vmatpush1.bf16.msra.mxu0 0
        %1783 = vmatprep.subr.bf16.mxu0 0
        %1784 = vmatpush1.bf16.msra.mxu0 0
        %1785 = vmatprep.subr.bf16.mxu0 0
        %1786 = vmatpush1.bf16.msra.mxu0 0
        %1787 = vmatprep.subr.bf16.mxu0 0
        %1788 = vmatpush1.bf16.msra.mxu0 0
        %1789 = vmatprep.subr.bf16.mxu0 0
        %1790 = vmatpush1.bf16.msra.mxu0 %v1770
        %1791 = vmatprep.subr.bf16.mxu0 0
        %1792 = vmatpush2.bf16.msra.mxu0 0
        %1793 = vmatprep.subr.bf16.mxu0 0
        %1794 = vmatpush2.bf16.msra.mxu0 0
        %1795 = vmatprep.subr.bf16.mxu0 0
        %1796 = vmatpush2.bf16.msra.mxu0 0
        %1797 = vmatprep.subr.bf16.mxu0 0
        %1798 = vmatpush2.bf16.msra.mxu0 0
        %1799 = vmatprep.subr.bf16.mxu0 0
        %1800 = vmatpush2.bf16.msra.mxu0 0
        %1801 = vmatprep.subr.bf16.mxu0 0
        %1802 = vmatpush2.bf16.msra.mxu0 0
        %1803 = vmatprep.subr.bf16.mxu0 0
        %1804 = vmatpush2.bf16.msra.mxu0 0
        %1805 = vmatprep.subr.bf16.mxu0 0
        %1806 = vmatpush2.bf16.msra.mxu0 0
        %1807 = vmatprep.mubr.bf16.mxu0 0
        %1808 = vmatmul.mubr.bf16.gmra.mxu0 %v1773
        %v1809 = vpop.f32.mrf.mxu0
        %v1810 = vadd.f32 0.0, %v1809
        %v1811 = vpop.f32.mrf.mxu0
        %v1812 = vpop.f32.mrf.mxu0
        %v1813 = vadd.f32 0.0, %v1812
        %v1814 = vpop.f32.mrf.mxu0
        %1815 = vdwg.mxu0
        %v1818 = vunpack.c.l.b16 %v1323
        %v1819 = vunpack.c.l.b16 %v1324
        %v1820 = vpack.c.b16 %v1819, %v1818
        %v1823 = vsel %vm1327, %v1538, 0
        %1825 = vmatprep.subr.bf16.mxu0 0
        %1826 = vmatpush1.bf16.msra.mxu0 0
        %1827 = vmatprep.subr.bf16.mxu0 0
        %1828 = vmatpush1.bf16.msra.mxu0 0
        %1829 = vmatprep.subr.bf16.mxu0 0
        %1830 = vmatpush1.bf16.msra.mxu0 0
        %1831 = vmatprep.subr.bf16.mxu0 0
        %1832 = vmatpush1.bf16.msra.mxu0 0
        %1833 = vmatprep.subr.bf16.mxu0 0
        %1834 = vmatpush1.bf16.msra.mxu0 0
        %1835 = vmatprep.subr.bf16.mxu0 0
        %1836 = vmatpush1.bf16.msra.mxu0 0
        %1837 = vmatprep.subr.bf16.mxu0 0
        %1838 = vmatpush1.bf16.msra.mxu0 0
        %1839 = vmatprep.subr.bf16.mxu0 0
        %1840 = vmatpush1.bf16.msra.mxu0 %v1820
        %1841 = vmatprep.subr.bf16.mxu0 0
        %1842 = vmatpush2.bf16.msra.mxu0 0
        %1843 = vmatprep.subr.bf16.mxu0 0
        %1844 = vmatpush2.bf16.msra.mxu0 0
        %1845 = vmatprep.subr.bf16.mxu0 0
        %1846 = vmatpush2.bf16.msra.mxu0 0
        %1847 = vmatprep.subr.bf16.mxu0 0
        %1848 = vmatpush2.bf16.msra.mxu0 0
        %1849 = vmatprep.subr.bf16.mxu0 0
        %1850 = vmatpush2.bf16.msra.mxu0 0
        %1851 = vmatprep.subr.bf16.mxu0 0
        %1852 = vmatpush2.bf16.msra.mxu0 0
        %1853 = vmatprep.subr.bf16.mxu0 0
        %1854 = vmatpush2.bf16.msra.mxu0 0
        %1855 = vmatprep.subr.bf16.mxu0 0
        %1856 = vmatpush2.bf16.msra.mxu0 0
        %1857 = vmatprep.mubr.bf16.mxu0 0
        %1858 = vmatmul.mubr.bf16.gmra.mxu0 %v1823
        %v1859 = vpop.f32.mrf.mxu0
        %v1860 = vadd.f32 %v1810, %v1859
        %v1861 = vpop.f32.mrf.mxu0
        %v1862 = vpop.f32.mrf.mxu0
        %v1863 = vadd.f32 %v1813, %v1862
        %v1864 = vpop.f32.mrf.mxu0
        %1865 = vdwg.mxu0
        %v1866 = vadd.f32 %v1069, %v1860
        %v1867 = vadd.f32 %v1070, %v1863
        %v1868 = vld [vmem:[%s891] sm:$0x1]
        %v1870 = vlaneseq
        %v1871 = vshrl.u32 %v1870, 7
        %v1872 = vsub.s32 0, %v1871
        %v1873 = vrot.slane %v1868, %v1872
        %v1875 = vadd.f32 %v1866, %v1873
        %v1876 = vadd.f32 %v1867, %v1873
        %v1877 = vld [vmem:[%s899] sm:$0x1]
        %v1878 = vld [vmem:[%s1047] sm:$0x1]
        %v1879 = vsel %vm1075, %v1875, 0.0
        %1880 = vadd.xlane.f32.xlu0 %v1879
        %v1881 = vpop.xlane.xlu0 %1880
        %v1882 = vsel %vm1075, %v1876, 0.0
        %1883 = vadd.xlane.f32.xlu0 %v1882
        %v1884 = vpop.xlane.xlu0 %1883
        %v1885 = vmul.f32 %v1881, %v1082
        %v1886 = vmul.f32 %v1884, %v1082
        %v1887 = vsub.f32 %v1875, %v1885
        %v1888 = vsub.f32 %v1876, %v1886
        %v1889 = vmul.f32 %v1887, %v1887
        %v1890 = vmul.f32 %v1888, %v1888
        %v1891 = vsel %vm1075, %v1889, 0.0
        %1892 = vadd.xlane.f32.xlu0 %v1891
        %v1893 = vpop.xlane.xlu0 %1892
        %v1894 = vsel %vm1075, %v1890, 0.0
        %1895 = vadd.xlane.f32.xlu0 %v1894
        %v1896 = vpop.xlane.xlu0 %1895
        %v1897 = vmul.f32 %v1893, %v1082
        %v1898 = vmul.f32 %v1896, %v1082
        %v1899 = vadd.f32 %v1897, 1e-05
        %v1900 = vadd.f32 %v1898, 1e-05
        %v1901 = vrsqrt.pop %v1899
        %v1902 = vrsqrt.pop %v1900
        %v1903 = vmul.f32 %v1887, %v1901
        %v1904 = vmul.f32 %v1888, %v1902
        %v1906 = vlaneseq
        %v1907 = vshrl.u32 %v1906, 7
        %v1908 = vsub.s32 0, %v1907
        %v1909 = vrot.slane %v1877, %v1908
        %v1911 = vmul.f32 %v1903, %v1909
        %v1912 = vmul.f32 %v1904, %v1909
        %v1914 = vlaneseq
        %v1915 = vshrl.u32 %v1914, 7
        %v1916 = vsub.s32 0, %v1915
        %v1917 = vrot.slane %v1878, %v1916
        %v1919 = vadd.f32 %v1911, %v1917
        %v1920 = vadd.f32 %v1912, %v1917
        %v1921 = vpack.c.bf16 %v1920, %v1919
        %v1922 = vld [vmem:[%s908] sm:$0xf]
        %v1923 = vld [vmem:[%s908 + $0x4] sm:$0xf]
        %v1924 = vld [vmem:[%s908 + $0x8] sm:$0xf]
        %v1925 = vld [vmem:[%s908 + $0xc] sm:$0xf]
        %v1926 = vld [vmem:[%s1050] sm:$0x1]
        %v1928 = vlaneseq
        %v1929 = vshrl.u32 %v1928, 7
        %v1930 = vsub.s32 0, %v1929
        %v1931 = vrot.slane %v1926, %v1930
        %v1937 = vunpack.c.l.b16 %v1922
        %v1938 = vunpack.c.l.b16 %v1923
        %v1939 = vunpack.c.l.b16 %v1924
        %v1940 = vunpack.c.l.b16 %v1925
        %v1941 = vpack.c.b16 %v1938, %v1937
        %v1942 = vpack.c.b16 %v1940, %v1939
        %v1946 = vsel %vm1075, %v1921, 0
        %1948 = vmatprep.subr.bf16.mxu0 0
        %1949 = vmatpush1.bf16.msra.mxu0 0
        %1950 = vmatprep.subr.bf16.mxu0 0
        %1951 = vmatpush1.bf16.msra.mxu0 0
        %1952 = vmatprep.subr.bf16.mxu0 0
        %1953 = vmatpush1.bf16.msra.mxu0 0
        %1954 = vmatprep.subr.bf16.mxu0 0
        %1955 = vmatpush1.bf16.msra.mxu0 0
        %1956 = vmatprep.subr.bf16.mxu0 0
        %1957 = vmatpush1.bf16.msra.mxu0 0
        %1958 = vmatprep.subr.bf16.mxu0 0
        %1959 = vmatpush1.bf16.msra.mxu0 0
        %1960 = vmatprep.subr.bf16.mxu0 0
        %1961 = vmatpush1.bf16.msra.mxu0 %v1942
        %1962 = vmatprep.subr.bf16.mxu0 0
        %1963 = vmatpush1.bf16.msra.mxu0 %v1941
        %1964 = vmatprep.subr.bf16.mxu0 0
        %1965 = vmatpush2.bf16.msra.mxu0 0
        %1966 = vmatprep.subr.bf16.mxu0 0
        %1967 = vmatpush2.bf16.msra.mxu0 0
        %1968 = vmatprep.subr.bf16.mxu0 0
        %1969 = vmatpush2.bf16.msra.mxu0 0
        %1970 = vmatprep.subr.bf16.mxu0 0
        %1971 = vmatpush2.bf16.msra.mxu0 0
        %1972 = vmatprep.subr.bf16.mxu0 0
        %1973 = vmatpush2.bf16.msra.mxu0 0
        %1974 = vmatprep.subr.bf16.mxu0 0
        %1975 = vmatpush2.bf16.msra.mxu0 0
        %1976 = vmatprep.subr.bf16.mxu0 0
        %1977 = vmatpush2.bf16.msra.mxu0 0
        %1978 = vmatprep.subr.bf16.mxu0 0
        %1979 = vmatpush2.bf16.msra.mxu0 0
        %1980 = vmatprep.mubr.bf16.mxu0 0
        %1981 = vmatmul.mubr.bf16.gmra.mxu0 %v1946
        %v1982 = vpop.f32.mrf.mxu0
        %v1983 = vadd.f32 %v1931, %v1982
        %v1984 = vpop.f32.mrf.mxu0
        %v1985 = vpop.f32.mrf.mxu0
        %v1986 = vadd.f32 %v1931, %v1985
        %v1987 = vpop.f32.mrf.mxu0
        %1988 = vdwg.mxu0
        %v1989 = vmax.f32 %v1983, 0.0
        %v1990 = vmax.f32 %v1986, 0.0
        %v1991 = vpack.c.bf16 %v1990, %v1989
        %v1992 = vld [vmem:[%s1055] sm:$0xf]
        %v1993 = vld [vmem:[%s1055 + $0x4] sm:$0xf]
        %v1994 = vld [vmem:[%s1055 + $0x8] sm:$0xf]
        %v1995 = vld [vmem:[%s1055 + $0xc] sm:$0xf]
        %v1996 = vld [vmem:[%s1055 + $0x10] sm:$0xf]
        %v1997 = vld [vmem:[%s1055 + $0x14] sm:$0xf]
        %v1998 = vld [vmem:[%s1055 + $0x18] sm:$0xf]
        %v1999 = vld [vmem:[%s1055 + $0x1c] sm:$0xf]
        %v2000 = vld [vmem:[%s1058] sm:$0x1]
        %v2002 = vlaneseq
        %v2003 = vshrl.u32 %v2002, 7
        %v2004 = vsub.s32 0, %v2003
        %v2005 = vrot.slane %v2000, %v2004
        %v2015 = vunpack.c.l.b16 %v1992
        %v2016 = vunpack.c.l.b16 %v1993
        %v2017 = vunpack.c.l.b16 %v1994
        %v2018 = vunpack.c.l.b16 %v1995
        %v2019 = vunpack.c.l.b16 %v1996
        %v2020 = vunpack.c.l.b16 %v1997
        %v2021 = vunpack.c.l.b16 %v1998
        %v2022 = vunpack.c.l.b16 %v1999
        %v2023 = vpack.c.b16 %v2016, %v2015
        %v2024 = vpack.c.b16 %v2018, %v2017
        %v2025 = vpack.c.b16 %v2020, %v2019
        %v2026 = vpack.c.b16 %v2022, %v2021
        %vm2031 = vcmask 523264
        %v2033 = vsel %vm2031, %v1991, 0
        %2035 = vmatprep.subr.bf16.mxu0 0
        %2036 = vmatpush1.bf16.msra.mxu0 0
        %2037 = vmatprep.subr.bf16.mxu0 0
        %2038 = vmatpush1.bf16.msra.mxu0 0
        %2039 = vmatprep.subr.bf16.mxu0 0
        %2040 = vmatpush1.bf16.msra.mxu0 0
        %2041 = vmatprep.subr.bf16.mxu0 0
        %2042 = vmatpush1.bf16.msra.mxu0 0
        %2043 = vmatprep.subr.bf16.mxu0 0
        %2044 = vmatpush1.bf16.msra.mxu0 %v2026
        %2045 = vmatprep.subr.bf16.mxu0 0
        %2046 = vmatpush1.bf16.msra.mxu0 %v2025
        %2047 = vmatprep.subr.bf16.mxu0 0
        %2048 = vmatpush1.bf16.msra.mxu0 %v2024
        %2049 = vmatprep.subr.bf16.mxu0 0
        %2050 = vmatpush1.bf16.msra.mxu0 %v2023
        %2051 = vmatprep.subr.bf16.mxu0 0
        %2052 = vmatpush2.bf16.msra.mxu0 0
        %2053 = vmatprep.subr.bf16.mxu0 0
        %2054 = vmatpush2.bf16.msra.mxu0 0
        %2055 = vmatprep.subr.bf16.mxu0 0
        %2056 = vmatpush2.bf16.msra.mxu0 0
        %2057 = vmatprep.subr.bf16.mxu0 0
        %2058 = vmatpush2.bf16.msra.mxu0 0
        %2059 = vmatprep.subr.bf16.mxu0 0
        %2060 = vmatpush2.bf16.msra.mxu0 0
        %2061 = vmatprep.subr.bf16.mxu0 0
        %2062 = vmatpush2.bf16.msra.mxu0 0
        %2063 = vmatprep.subr.bf16.mxu0 0
        %2064 = vmatpush2.bf16.msra.mxu0 0
        %2065 = vmatprep.subr.bf16.mxu0 0
        %2066 = vmatpush2.bf16.msra.mxu0 0
        %2067 = vmatprep.mubr.bf16.mxu0 0
        %2068 = vmatmul.mubr.bf16.gmra.mxu0 %v2033
        %v2069 = vpop.f32.mrf.mxu0
        %v2070 = vadd.f32 %v2005, %v2069
        %v2071 = vpop.f32.mrf.mxu0
        %v2072 = vpop.f32.mrf.mxu0
        %v2073 = vadd.f32 %v2005, %v2072
        %v2074 = vpop.f32.mrf.mxu0
        %2075 = vdwg.mxu0
        %v2076 = vadd.f32 %v1875, %v2070
        %v2077 = vadd.f32 %v1876, %v2073
        %2078 = vst.msk [vmem:[#allocation2] sm:$0xff] %vm1075, %v2076
        %2079 = vst.msk [vmem:[#allocation2 + $0x8] sm:$0xff] %vm1075, %v2077
        %p2080 = scmp.eq.s32.totalorder %s36, 1
        // Predicated region
        $region149: #{tpu_custom_call.1} parent=107 // pred_check
          %p2081 = pneg %p2080
        $region150: #{tpu_custom_call.1} parent=107 // pred_check_branch
          %2083 = sbr.rel (%p2081) target = $region152
        $region151: #{tpu_custom_call.1} parent=107 // pred_region
          %v2084 = vld [vmem:[%s18] sm:$0x1]
          %v2085 = vld [vmem:[%s19] sm:$0x1]
          %v2086 = vsel %vm1075, %v2076, 0.0
          %2087 = vadd.xlane.f32.xlu0 %v2086
          %v2088 = vpop.xlane.xlu0 %2087
          %v2089 = vsel %vm1075, %v2077, 0.0
          %2090 = vadd.xlane.f32.xlu0 %v2089
          %v2091 = vpop.xlane.xlu0 %2090
          %v2092 = vmul.f32 %v2088, %v1082
          %v2093 = vmul.f32 %v2091, %v1082
          %v2094 = vsub.f32 %v2076, %v2092
          %v2095 = vsub.f32 %v2077, %v2093
          %v2096 = vmul.f32 %v2094, %v2094
          %v2097 = vmul.f32 %v2095, %v2095
          %v2098 = vsel %vm1075, %v2096, 0.0
          %2099 = vadd.xlane.f32.xlu0 %v2098
          %v2100 = vpop.xlane.xlu0 %2099
          %v2101 = vsel %vm1075, %v2097, 0.0
          %2102 = vadd.xlane.f32.xlu0 %v2101
          %v2103 = vpop.xlane.xlu0 %2102
          %v2104 = vmul.f32 %v2100, %v1082
          %v2105 = vmul.f32 %v2103, %v1082
          %v2106 = vadd.f32 %v2104, 1e-05
          %v2107 = vadd.f32 %v2105, 1e-05
          %v2108 = vrsqrt.pop %v2106
          %v2109 = vrsqrt.pop %v2107
          %v2110 = vmul.f32 %v2094, %v2108
          %v2111 = vmul.f32 %v2095, %v2109
          %v2113 = vlaneseq
          %v2114 = vshrl.u32 %v2113, 7
          %v2115 = vsub.s32 0, %v2114
          %v2116 = vrot.slane %v2084, %v2115
          %v2118 = vmul.f32 %v2110, %v2116
          %v2119 = vmul.f32 %v2111, %v2116
          %v2121 = vlaneseq
          %v2122 = vshrl.u32 %v2121, 7
          %v2123 = vsub.s32 0, %v2122
          %v2124 = vrot.slane %v2085, %v2123
          %v2126 = vadd.f32 %v2118, %v2124
          %v2127 = vadd.f32 %v2119, %v2124
          %v2128 = vpack.c.bf16 %v2127, %v2126
          %v2129 = vld [vmem:[%s20] sm:$0xf]
          %v2130 = vld [vmem:[%s20 + $0x4] sm:$0xf]
          %v2131 = vld [vmem:[%s20 + $0x8] sm:$0xf]
          %v2132 = vld [vmem:[%s20 + $0xc] sm:$0xf]
          %v2133 = vld [vmem:[%s21] sm:$0x1]
          %v2135 = vlaneseq
          %v2136 = vshrl.u32 %v2135, 7
          %v2137 = vsub.s32 0, %v2136
          %v2138 = vrot.slane %v2133, %v2137
          %v2144 = vunpack.c.l.b16 %v2129
          %v2145 = vunpack.c.l.b16 %v2130
          %v2146 = vunpack.c.l.b16 %v2131
          %v2147 = vunpack.c.l.b16 %v2132
          %v2148 = vpack.c.b16 %v2145, %v2144
          %v2149 = vpack.c.b16 %v2147, %v2146
          %v2153 = vsel %vm1075, %v2128, 0
          %2155 = vmatprep.subr.bf16.mxu0 0
          %2156 = vmatpush1.bf16.msra.mxu0 0
          %2157 = vmatprep.subr.bf16.mxu0 0
          %2158 = vmatpush1.bf16.msra.mxu0 0
          %2159 = vmatprep.subr.bf16.mxu0 0
          %2160 = vmatpush1.bf16.msra.mxu0 0
          %2161 = vmatprep.subr.bf16.mxu0 0
          %2162 = vmatpush1.bf16.msra.mxu0 0
          %2163 = vmatprep.subr.bf16.mxu0 0
          %2164 = vmatpush1.bf16.msra.mxu0 0
          %2165 = vmatprep.subr.bf16.mxu0 0
          %2166 = vmatpush1.bf16.msra.mxu0 0
          %2167 = vmatprep.subr.bf16.mxu0 0
          %2168 = vmatpush1.bf16.msra.mxu0 %v2149
          %2169 = vmatprep.subr.bf16.mxu0 0
          %2170 = vmatpush1.bf16.msra.mxu0 %v2148
          %2171 = vmatprep.subr.bf16.mxu0 0
          %2172 = vmatpush2.bf16.msra.mxu0 0
          %2173 = vmatprep.subr.bf16.mxu0 0
          %2174 = vmatpush2.bf16.msra.mxu0 0
          %2175 = vmatprep.subr.bf16.mxu0 0
          %2176 = vmatpush2.bf16.msra.mxu0 0
          %2177 = vmatprep.subr.bf16.mxu0 0
          %2178 = vmatpush2.bf16.msra.mxu0 0
          %2179 = vmatprep.subr.bf16.mxu0 0
          %2180 = vmatpush2.bf16.msra.mxu0 0
          %2181 = vmatprep.subr.bf16.mxu0 0
          %2182 = vmatpush2.bf16.msra.mxu0 0
          %2183 = vmatprep.subr.bf16.mxu0 0
          %2184 = vmatpush2.bf16.msra.mxu0 0
          %2185 = vmatprep.subr.bf16.mxu0 0
          %2186 = vmatpush2.bf16.msra.mxu0 0
          %2187 = vmatprep.mubr.bf16.mxu0 0
          %2188 = vmatmul.mubr.bf16.gmra.mxu0 %v2153
          %v2189 = vpop.f32.mrf.mxu0
          %v2190 = vadd.f32 %v2138, %v2189
          %v2191 = vpop.f32.mrf.mxu0
          %v2192 = vpop.f32.mrf.mxu0
          %v2193 = vadd.f32 %v2138, %v2192
          %v2194 = vpop.f32.mrf.mxu0
          %2195 = vdwg.mxu0
          %2196 = vmax.xlane.f32.xlu0 %v2190
          %v2197 = vpop.xlane.xlu0 %2196
          %2198 = vmax.xlane.f32.xlu0 %v2193
          %v2199 = vpop.xlane.xlu0 %2198
          %v2200 = vsub.f32 %v2190, %v2197
          %v2201 = vsub.f32 %v2193, %v2199
          %v2202 = vmul.f32 %v2200, 1.442695
          %v2203 = vpow.pop %v2202
          %v2204 = vmul.f32 %v2201, 1.442695
          %v2205 = vpow.pop %v2204
          %2206 = vadd.xlane.f32.xlu0 %v2203
          %v2207 = vpop.xlane.xlu0 %2206
          %2208 = vadd.xlane.f32.xlu0 %v2205
          %v2209 = vpop.xlane.xlu0 %2208
          %v2210 = vlog2.pop %v2207
          %v2211 = vmul.f32 %v2210, 0.6931472
          %v2212 = vlog2.pop %v2209
          %v2213 = vmul.f32 %v2212, 0.6931472
          %v2214 = vsub.f32 %v2200, %v2211
          %v2215 = vsub.f32 %v2201, %v2213
          %2216 = vst [vmem:[#allocation15] sm:$0xff] %v2214
          %2217 = vst [vmem:[#allocation15 + $0x8] sm:$0xff] %v2215
        $region152: #{tpu_custom_call.1} parent=107 // pred_fallthru
          _
        // Predicated region
        $region153: #{tpu_custom_call.1} parent=107 // pred_check
          %p2218 = pneg %p591
        $region154: #{tpu_custom_call.1} parent=107 // pred_check_branch
          %2220 = sbr.rel (%p2218) target = $region156
        $region155: #{tpu_custom_call.1} parent=107 // pred_region
          %s2222 = ssub.s32 256, 256
          %2223 = vsyncadd [#allocation5], %s2222
          %s2224 = sshll.u32 [#allocation15], 4
          %s2225 = int_to_ptr.vmem [resolvable:$true] %s2224
          %2230 = dma.vmem_to_hbm [thread:$0]  %s2225, 256, %s22, [#allocation5], 128, 128, 8
        $region156: #{tpu_custom_call.1} parent=107 // pred_fallthru
          _
        // Predicated region
        $region157: #{tpu_custom_call.1} parent=107 // pred_check
          %p2231 = pneg %p591
        $region158: #{tpu_custom_call.1} parent=107 // pred_check_branch
          %2233 = sbr.rel (%p2231) target = $region160
        $region159: #{tpu_custom_call.1} parent=107 // pred_region
          %2234 = dma.done [#allocation5], 256
        $region160: #{tpu_custom_call.1} parent=107 // pred_fallthru
          _
      $region108: #{tpu_custom_call.1} parent=5 // pred_fallthru
        _
      %p2235 = scmp.le.s32.totalorder 2, %s31
      // Predicated region
      $region161: #{tpu_custom_call.1} parent=5 // pred_check
        %p2236 = pneg %p2235
      $region162: #{tpu_custom_call.1} parent=5 // pred_check_branch
        %2238 = sbr.rel (%p2236) target = $region164
      $region163: #{tpu_custom_call.1} parent=5 // pred_region
        %s2239 = ssub.s32 %s31, 2
      $region164: #{tpu_custom_call.1} parent=5 // pred_fallthru
        _
    $region6: #{tpu_custom_call.1} parent=1 // loop_footer
      %s35 = sadd.s32 1, %s31
    $region7: #{tpu_custom_call.1} parent=1 // loop_footer_branch
      %30 = sbr.rel target = $region3
    $region8: #{tpu_custom_call.1} parent=1 // loop_exit
      _
    %2240 = vsyncpa [#allocation4], 1
    %s2241 = scalar_lea.sflag [#allocation4], 1
    %2242 = vsyncpa %s2241, 1
    %2243 = vsyncpa [#allocation7], 1
    %2244 = vsyncpa [#allocation5], 1
    %s2245 = scalar_lea.sflag [#allocation5], 1
    %2246 = vsyncpa %s2245, 1

</llo_original>
